<compile_context>
chip_gen: v6e
topology: v6e:2x2x1
jax: 0.10.0
libtpu: 0.0.40
codegen_flags: <defaults>
</compile_context>

<pallas_src>
import functools

import jax
import jax.numpy as jnp
from jax.experimental import pallas as pl
from jax.experimental.pallas import tpu as pltpu

NEG_INF = -1e30  # finite "minus infinity" (avoids inf-inf NaN corner cases)


# ----------------------------------------------------------------------------
# Kernels
# ----------------------------------------------------------------------------
def decoder_state_kernel(emb_ref, h0_ref, enc_ref,
                         wih_ref, whh_ref, bih_ref, bhh_ref,
                         wch_ref, wcc_ref, bc_ref,
                         hout_ref, co_ref,
                         hbf_scr, m_scr, l_scr, acc_scr,
                         *, seq_len, tile_s):
    """grid = (num_batch_tiles [parallel], num_seq_tiles [arbitrary])."""
    s = pl.program_id(1)

    # ---- phase 0 (s == 0): GRU cell, PyTorch gate order (r, z, n) ----------
    @pl.when(s == 0)
    def _():
        x = emb_ref[...]                       # (Bt, Hp) bf16 embedded token
        h = h0_ref[...]                        # (Bt, Hp) f32 previous hidden
        Hp = h.shape[1]
        gi = jnp.dot(x, wih_ref[...],
                     preferred_element_type=jnp.float32) + bih_ref[...]
        gh = jnp.dot(h.astype(jnp.bfloat16), whh_ref[...],
                     preferred_element_type=jnp.float32) + bhh_ref[...]
        r = jax.nn.sigmoid(gi[:, 0:Hp] + gh[:, 0:Hp])
        z = jax.nn.sigmoid(gi[:, Hp:2 * Hp] + gh[:, Hp:2 * Hp])
        n = jnp.tanh(gi[:, 2 * Hp:3 * Hp] + r * gh[:, 2 * Hp:3 * Hp])
        h_new = (1.0 - z) * n + z * h          # (Bt, Hp) == rnn_output
        hout_ref[...] = h_new
        hbf_scr[...] = h_new.astype(jnp.bfloat16)
        # online-softmax state
        m_scr[...] = jnp.full(m_scr.shape, NEG_INF, jnp.float32)
        l_scr[...] = jnp.zeros(l_scr.shape, jnp.float32)
        acc_scr[...] = jnp.zeros(acc_scr.shape, jnp.float32)

    # ---- phase 1 (every s): online-softmax dot attention over this S tile --
    enc = enc_ref[...]                         # (Bt, Ts, Hp) bf16
    # scores via VPU multiply + lane reduce (1-row matvec would waste MXU rows)
    scores = jnp.sum(hbf_scr[...].astype(jnp.float32)[:, None, :]
                     * enc.astype(jnp.float32), axis=-1)          # (Bt, Ts)
    key_idx = jax.lax.broadcasted_iota(jnp.int32, scores.shape, 1) + s * tile_s
    scores = jnp.where(key_idx < seq_len, scores, NEG_INF)        # mask pad keys

    m_prev = m_scr[...]                                            # (Bt, 1)
    m_new = jnp.maximum(m_prev, jnp.max(scores, axis=-1, keepdims=True))
    alpha = jnp.exp(m_prev - m_new)
    p = jnp.exp(scores - m_new)                                    # (Bt, Ts)
    l_scr[...] = alpha * l_scr[...] + jnp.sum(p, axis=-1, keepdims=True)
    acc_scr[...] = alpha * acc_scr[...] + jnp.einsum(
        'bqs,bsh->bqh', p.astype(jnp.bfloat16)[:, None, :], enc,
        preferred_element_type=jnp.float32)[:, 0, :]              # MXU ctx acc
    m_scr[...] = m_new

    # ---- phase 2 (s == last): finalize ctx + split "concat" Linear + tanh --
    @pl.when(s == pl.num_programs(1) - 1)
    def _():
        ctx = acc_scr[...] * pl.reciprocal(l_scr[...], approx=True)
        co = jnp.tanh(
            jnp.dot(hbf_scr[...], wch_ref[...],
                    preferred_element_type=jnp.float32)
            + jnp.dot(ctx.astype(jnp.bfloat16), wcc_ref[...],
                      preferred_element_type=jnp.float32)
            + bc_ref[...])
        co_ref[...] = co.astype(jnp.bfloat16)


def vocab_kernel(co_ref, wo_ref, bo_ref, logits_ref):
    # one lane-dense (Bp, tile_o) tile of the output projection per grid step
    logits_ref[...] = (
        jnp.dot(co_ref[...], wo_ref[...], preferred_element_type=jnp.float32)
        + bo_ref[...])


# ----------------------------------------------------------------------------
# Helpers
# ----------------------------------------------------------------------------
def _round_up(x, m):
    return ((x + m - 1) // m) * m


def _pad_to_shape(x, shape):
    pads = [(0, t - s) for s, t in zip(x.shape, shape)]
    if not any(p[1] for p in pads):
        return x
    return jnp.pad(x, pads)


# ----------------------------------------------------------------------------
# Parameter construction / preparation
# ----------------------------------------------------------------------------
def init_params(key, hidden_size, output_size):
    """Raw parameters in PyTorch layout / f32 (source of truth)."""
    H, O = hidden_size, output_size
    ks = jax.random.split(key, 10)
    s = 0.1
    return {
        "embedding": s * jax.random.normal(ks[0], (O, H), jnp.float32),      # nn.Embedding
        "w_ih": s * jax.random.normal(ks[1], (3 * H, H), jnp.float32),       # GRU W_ih
        "w_hh": s * jax.random.normal(ks[2], (3 * H, H), jnp.float32),       # GRU W_hh
        "b_ih": s * jax.random.normal(ks[3], (3 * H,), jnp.float32),
        "b_hh": s * jax.random.normal(ks[4], (3 * H,), jnp.float32),
        "w_concat": s * jax.random.normal(ks[5], (H, 2 * H), jnp.float32),   # nn.Linear(2H,H)
        "b_concat": s * jax.random.normal(ks[6], (H,), jnp.float32),
        "w_out": s * jax.random.normal(ks[7], (O, H), jnp.float32),          # nn.Linear(H,O)
        "b_out": s * jax.random.normal(ks[8], (O,), jnp.float32),
    }


def prepare_params(raw, hidden_size, output_size, *, tile_o=512):
    """Pad to (8/16,128)-friendly sizes, transpose for x @ W, cast weights bf16."""
    H, O = hidden_size, output_size
    assert tile_o % 128 == 0
    Hp = _round_up(H, 128)
    tile_o = min(tile_o, _round_up(O, 128))   # don't over-pad tiny vocabs
    Op = _round_up(O, tile_o)

    def gate_pad_T(w):  # (3H, H) PyTorch -> (Hp, 3*Hp) transposed, per-gate padded
        blocks = [_pad_to_shape(w[g * H:(g + 1) * H, :].T, (Hp, Hp)) for g in range(3)]
        return jnp.concatenate(blocks, axis=1)

    def gate_pad_b(b):  # (3H,) -> (1, 3*Hp), per-gate padded
        blocks = [_pad_to_shape(b[g * H:(g + 1) * H], (Hp,)) for g in range(3)]
        return jnp.concatenate(blocks)[None, :]

    wc_T = raw["w_concat"].T   # (2H, H): rows [:H] multiply rnn_output, [H:] the context
    return {
        "H": H, "O": O, "Hp": Hp, "Op": Op, "tile_o": tile_o,
        "embedding": _pad_to_shape(raw["embedding"], (O, Hp)).astype(jnp.bfloat16),
        "w_ih_t": gate_pad_T(raw["w_ih"]).astype(jnp.bfloat16),
        "w_hh_t": gate_pad_T(raw["w_hh"]).astype(jnp.bfloat16),
        "b_ih": gate_pad_b(raw["b_ih"]).astype(jnp.float32),
        "b_hh": gate_pad_b(raw["b_hh"]).astype(jnp.float32),
        "wc_h": _pad_to_shape(wc_T[:H, :], (Hp, Hp)).astype(jnp.bfloat16),
        "wc_c": _pad_to_shape(wc_T[H:, :], (Hp, Hp)).astype(jnp.bfloat16),
        "b_concat": _pad_to_shape(raw["b_concat"], (Hp,))[None, :].astype(jnp.float32),
        "w_out_t": _pad_to_shape(raw["w_out"].T, (Hp, Op)).astype(jnp.bfloat16),
        "b_out": _pad_to_shape(raw["b_out"], (Op,))[None, :].astype(jnp.float32),
    }


# ----------------------------------------------------------------------------
# Forward pass
# ----------------------------------------------------------------------------
def decoder_forward(input_step, last_hidden, encoder_outputs, prepared,
                    *, encoder_batch_major=False, tile_s=256, tile_b=16):
    """
    input_step:       (1, B) int32 token ids
    last_hidden:      (L, B, H) f32, L == 1
    encoder_outputs:  (S, B, H) f32 (time-major, PyTorch layout) or (B, S, H)
                      if encoder_batch_major=True (preferred: avoids a copy).
    returns (output_probs (B, O) f32, hidden_state (1, B, H) f32)
    """
    assert tile_s % 16 == 0 and tile_b % 16 == 0
    p = prepared
    H, O, Hp, Op, tile_o = p["H"], p["O"], p["Hp"], p["Op"], p["tile_o"]
    B = input_step.shape[1]

    Bt = min(tile_b, _round_up(max(B, 16), 16))       # bf16-native batch tile
    Bp = _round_up(max(B, 16), Bt)

    # embedding lookup (embedding_dropout is identity in eval mode)
    emb = jnp.take(p["embedding"], input_step[0], axis=0)            # (B, Hp) bf16
    emb = _pad_to_shape(emb, (Bp, Hp))

    h0 = _pad_to_shape(last_hidden[0], (Bp, Hp)).astype(jnp.float32)  # (Bp, Hp)

    enc = encoder_outputs if encoder_batch_major else jnp.transpose(encoder_outputs, (1, 0, 2))
    S = enc.shape[1]
    Ts = min(tile_s, _round_up(S, 16))
    Sp = _round_up(S, Ts)
    enc = _pad_to_shape(enc, (Bp, Sp, Hp)).astype(jnp.bfloat16)       # (Bp, Sp, Hp)

    # ---- kernel 1: GRU + S-tiled online-softmax attention + concat Linear ----
    grid1 = (Bp // Bt, Sp // Ts)
    kernel1 = functools.partial(decoder_state_kernel, seq_len=S, tile_s=Ts)
    h_new_p, co_p = pl.pallas_call(
        kernel1,
        out_shape=(jax.ShapeDtypeStruct((Bp, Hp), jnp.float32),
                   jax.ShapeDtypeStruct((Bp, Hp), jnp.bfloat16)),
        grid=grid1,
        in_specs=[
            pl.BlockSpec((Bt, Hp), lambda b, s: (b, 0)),          # embedded tokens
            pl.BlockSpec((Bt, Hp), lambda b, s: (b, 0)),          # previous hidden
            pl.BlockSpec((Bt, Ts, Hp), lambda b, s: (b, s, 0)),   # encoder tile (streamed)
            pl.BlockSpec((Hp, 3 * Hp), lambda b, s: (0, 0)),      # GRU W_ih^T
            pl.BlockSpec((Hp, 3 * Hp), lambda b, s: (0, 0)),      # GRU W_hh^T
            pl.BlockSpec((1, 3 * Hp), lambda b, s: (0, 0)),       # GRU b_ih
            pl.BlockSpec((1, 3 * Hp), lambda b, s: (0, 0)),       # GRU b_hh
            pl.BlockSpec((Hp, Hp), lambda b, s: (0, 0)),          # concat W (rnn half)
            pl.BlockSpec((Hp, Hp), lambda b, s: (0, 0)),          # concat W (ctx half)
            pl.BlockSpec((1, Hp), lambda b, s: (0, 0)),           # concat b
        ],
        out_specs=(pl.BlockSpec((Bt, Hp), lambda b, s: (b, 0)),
                   pl.BlockSpec((Bt, Hp), lambda b, s: (b, 0))),
        scratch_shapes=[
            pltpu.VMEM((Bt, Hp), jnp.bfloat16),   # h_new bf16 (matmul operand)
            pltpu.VMEM((Bt, 1), jnp.float32),     # running max m
            pltpu.VMEM((Bt, 1), jnp.float32),     # running denom l
            pltpu.VMEM((Bt, Hp), jnp.float32),    # ctx accumulator
        ],
        compiler_params=pltpu.CompilerParams(
            dimension_semantics=("parallel", "arbitrary"),
            vmem_limit_bytes=32 * 1024 * 1024),
    )(emb, h0, enc,
      p["w_ih_t"], p["w_hh_t"], p["b_ih"], p["b_hh"],
      p["wc_h"], p["wc_c"], p["b_concat"])

    # ---- kernel 2: vocab projection, wide lane-dense tiles streamed over O ----
    nO = Op // tile_o
    logits_p = pl.pallas_call(
        vocab_kernel,
        out_shape=jax.ShapeDtypeStruct((Bp, Op), jnp.float32),
        grid=(nO,),
        in_specs=[
            pl.BlockSpec((Bp, Hp), lambda j: (0, 0)),        # co (resident)
            pl.BlockSpec((Hp, tile_o), lambda j: (0, j)),    # W_out tile (streamed)
            pl.BlockSpec((1, tile_o), lambda j: (0, j)),     # b_out tile
        ],
        out_specs=pl.BlockSpec((Bp, tile_o), lambda j: (0, j)),
        compiler_params=pltpu.CompilerParams(
            dimension_semantics=("parallel",),
            vmem_limit_bytes=32 * 1024 * 1024),
    )(co_p, p["w_out_t"], p["b_out"])

    # un-pad + exact softmax on the real vocab (reviewer-sanctioned wrapper step)
    probs = jax.nn.softmax(logits_p[:B, :O], axis=-1)                 # (B, O)
    hidden = h_new_p[:B, :H][None]                                    # (1, B, H)
    return probs, hidden


# ----------------------------------------------------------------------------
# Pure-JAX f32 reference (mirrors the PyTorch module exactly)
# ----------------------------------------------------------------------------
def decoder_reference(input_step, last_hidden, encoder_outputs, raw):
    H = last_hidden.shape[2]
    emb = raw["embedding"][input_step[0]]                    # (B, H)
    h = last_hidden[0]
    gi = emb @ raw["w_ih"].T + raw["b_ih"]
    gh = h @ raw["w_hh"].T + raw["b_hh"]
    r = jax.nn.sigmoid(gi[:, :H] + gh[:, :H])
    z = jax.nn.sigmoid(gi[:, H:2 * H] + gh[:, H:2 * H])
    n = jnp.tanh(gi[:, 2 * H:] + r * gh[:, 2 * H:])
    h_new = (1.0 - z) * n + z * h
    enc = jnp.transpose(encoder_outputs, (1, 0, 2))          # (B, S, H)
    scores = jnp.einsum('bh,bsh->bs', h_new, enc)
    attn = jax.nn.softmax(scores, axis=-1)
    ctx = jnp.einsum('bs,bsh->bh', attn, enc)
    co = jnp.tanh(jnp.concatenate([h_new, ctx], axis=1) @ raw["w_concat"].T + raw["b_concat"])
    logits = co @ raw["w_out"].T + raw["b_out"]
    return jax.nn.softmax(logits, axis=-1), h_new[None]


# ----------------------------------------------------------------------------
if __name__ == "__main__":
    B, H, S, O, L = 2, 32, 8, 384, 1    # small demo shapes

    key = jax.random.PRNGKey(0)
    k_in, k_h, k_enc, k_params = jax.random.split(key, 4)

    input_step = jax.random.randint(k_in, (1, B), 0, O, dtype=jnp.int32)      # (1, B)
    last_hidden = jax.random.normal(k_h, (L, B, H), jnp.float32)              # (1, B, H)
    encoder_outputs = jax.random.normal(k_enc, (S, B, H), jnp.float32)        # (S, B, H)

    raw_params = init_params(k_params, H, O)
    prepared = prepare_params(raw_params, H, O, tile_o=512)

    out_probs, hidden_new = decoder_forward(input_step, last_hidden,
                                            encoder_outputs, prepared)
    jax.block_until_ready((out_probs, hidden_new))

    # shape / softmax sanity
    assert out_probs.shape == (B, O)
    assert hidden_new.shape == (L, B, H)
    row_sums = jnp.sum(out_probs, axis=1)
    assert bool(jnp.all(jnp.abs(row_sums - 1.0) < 1e-4))

    # compare against the pure-JAX f32 reference (bf16 weights => loose tolerance)
    ref_probs, ref_hidden = decoder_reference(input_step, last_hidden,
                                              encoder_outputs, raw_params)
    assert float(jnp.max(jnp.abs(out_probs - ref_probs))) < 5e-3
    assert float(jnp.max(jnp.abs(hidden_new - ref_hidden))) < 5e-2

    print("KERNEL_OK")
</pallas_src>

<mosaic_0001>
module attributes {stable_mosaic.version = 11 : i64} {
  func.func @decoder_state_kernel(%arg0: i32, %arg1: i32, %arg2: memref<16x128xbf16, #tpu.memory_space<vmem>>, %arg3: memref<16x128xf32, #tpu.memory_space<vmem>>, %arg4: memref<16x16x128xbf16, #tpu.memory_space<vmem>>, %arg5: memref<128x384xbf16, #tpu.memory_space<vmem>>, %arg6: memref<128x384xbf16, #tpu.memory_space<vmem>>, %arg7: memref<1x384xf32, #tpu.memory_space<vmem>>, %arg8: memref<1x384xf32, #tpu.memory_space<vmem>>, %arg9: memref<128x128xbf16, #tpu.memory_space<vmem>>, %arg10: memref<128x128xbf16, #tpu.memory_space<vmem>>, %arg11: memref<1x128xf32, #tpu.memory_space<vmem>>, %arg12: memref<16x128xf32, #tpu.memory_space<vmem>>, %arg13: memref<16x128xbf16, #tpu.memory_space<vmem>>, %arg14: memref<16x128xbf16, #tpu.memory_space<vmem>>, %arg15: memref<16x1xf32, #tpu.memory_space<vmem>>, %arg16: memref<16x1xf32, #tpu.memory_space<vmem>>, %arg17: memref<16x128xf32, #tpu.memory_space<vmem>>) attributes {dimension_semantics = [#tpu.dimension_semantics<parallel>, #tpu.dimension_semantics<arbitrary>], iteration_bounds = array<i64: 1, 1>, scalar_prefetch = 0 : i64, scratch_operands = 4 : i64, tpu.core_type = #tpu.core_type<tc>, window_params = [{transform_indices = @transform_0, window_bounds = array<i64: 16, 128>}, {transform_indices = @transform_1, window_bounds = array<i64: 16, 128>}, {transform_indices = @transform_2, window_bounds = array<i64: 16, 16, 128>}, {pipeline_mode = #tpu.pipeline_mode<synchronous>, transform_indices = @transform_3, window_bounds = array<i64: 128, 384>}, {pipeline_mode = #tpu.pipeline_mode<synchronous>, transform_indices = @transform_4, window_bounds = array<i64: 128, 384>}, {pipeline_mode = #tpu.pipeline_mode<synchronous>, transform_indices = @transform_5, window_bounds = array<i64: 1, 384>}, {pipeline_mode = #tpu.pipeline_mode<synchronous>, transform_indices = @transform_6, window_bounds = array<i64: 1, 384>}, {pipeline_mode = #tpu.pipeline_mode<synchronous>, transform_indices = @transform_7, window_bounds = array<i64: 128, 128>}, {pipeline_mode = #tpu.pipeline_mode<synchronous>, transform_indices = @transform_8, window_bounds = array<i64: 128, 128>}, {pipeline_mode = #tpu.pipeline_mode<synchronous>, transform_indices = @transform_9, window_bounds = array<i64: 1, 128>}, {transform_indices = @transform_10, window_bounds = array<i64: 16, 128>}, {transform_indices = @transform_11, window_bounds = array<i64: 16, 128>}]} {
    %c0_i32 = arith.constant 0 : i32
    %0 = arith.cmpi eq, %arg1, %c0_i32 : i32
    %1 = arith.extui %0 : i1 to i32
    %c0_i32_0 = arith.constant 0 : i32
    %2 = arith.cmpi ne, %1, %c0_i32_0 : i32
    scf.if %2 {
      %c0_23 = arith.constant 0 : index
      %c0_24 = arith.constant 0 : index
      %47 = vector.load %arg2[%c0_23, %c0_24] : memref<16x128xbf16, #tpu.memory_space<vmem>>, vector<16x128xbf16>
      %c0_25 = arith.constant 0 : index
      %c0_26 = arith.constant 0 : index
      %48 = vector.load %arg3[%c0_25, %c0_26] : memref<16x128xf32, #tpu.memory_space<vmem>>, vector<16x128xf32>
      %c0_27 = arith.constant 0 : index
      %c0_28 = arith.constant 0 : index
      %49 = vector.load %arg5[%c0_27, %c0_28] : memref<128x384xbf16, #tpu.memory_space<vmem>>, vector<128x384xbf16>
      %cst_29 = arith.constant dense<0.000000e+00> : vector<16x384xf32>
      %50 = tpu.matmul %47, %49, %cst_29 {dimension_numbers = #tpu.dot_dimension_numbers<[1], [0], [0], [1], [0, 0, 1, 1], [], []>} : vector<16x128xbf16>, vector<128x384xbf16>, vector<16x384xf32> -> vector<16x384xf32>
      %c0_30 = arith.constant 0 : index
      %c0_31 = arith.constant 0 : index
      %51 = vector.load %arg7[%c0_30, %c0_31] : memref<1x384xf32, #tpu.memory_space<vmem>>, vector<1x384xf32>
      %52 = vector.broadcast %51 : vector<1x384xf32> to vector<16x384xf32>
      %53 = arith.addf %50, %52 : vector<16x384xf32>
      %54 = arith.truncf %48 : vector<16x128xf32> to vector<16x128xbf16>
      %c0_32 = arith.constant 0 : index
      %c0_33 = arith.constant 0 : index
      %55 = vector.load %arg6[%c0_32, %c0_33] : memref<128x384xbf16, #tpu.memory_space<vmem>>, vector<128x384xbf16>
      %cst_34 = arith.constant dense<0.000000e+00> : vector<16x384xf32>
      %56 = tpu.matmul %54, %55, %cst_34 {dimension_numbers = #tpu.dot_dimension_numbers<[1], [0], [0], [1], [0, 0, 1, 1], [], []>} : vector<16x128xbf16>, vector<128x384xbf16>, vector<16x384xf32> -> vector<16x384xf32>
      %c0_35 = arith.constant 0 : index
      %c0_36 = arith.constant 0 : index
      %57 = vector.load %arg8[%c0_35, %c0_36] : memref<1x384xf32, #tpu.memory_space<vmem>>, vector<1x384xf32>
      %58 = vector.broadcast %57 : vector<1x384xf32> to vector<16x384xf32>
      %59 = arith.addf %56, %58 : vector<16x384xf32>
      %60 = vector.extract_strided_slice %53 {offsets = [0, 0], sizes = [16, 128], strides = [1, 1]} : vector<16x384xf32> to vector<16x128xf32>
      %61 = vector.extract_strided_slice %59 {offsets = [0, 0], sizes = [16, 128], strides = [1, 1]} : vector<16x384xf32> to vector<16x128xf32>
      %62 = arith.addf %60, %61 : vector<16x128xf32>
      %63 = arith.negf %62 : vector<16x128xf32>
      %64 = math.exp %63 : vector<16x128xf32>
      %cst_37 = arith.constant 1.000000e+00 : f32
      %65 = vector.broadcast %cst_37 : f32 to vector<16x128xf32>
      %66 = arith.addf %65, %64 : vector<16x128xf32>
      %67 = arith.divf %65, %66 : vector<16x128xf32>
      %68 = vector.extract_strided_slice %53 {offsets = [0, 128], sizes = [16, 128], strides = [1, 1]} : vector<16x384xf32> to vector<16x128xf32>
      %69 = vector.extract_strided_slice %59 {offsets = [0, 128], sizes = [16, 128], strides = [1, 1]} : vector<16x384xf32> to vector<16x128xf32>
      %70 = arith.addf %68, %69 : vector<16x128xf32>
      %71 = arith.negf %70 : vector<16x128xf32>
      %72 = math.exp %71 : vector<16x128xf32>
      %cst_38 = arith.constant 1.000000e+00 : f32
      %73 = vector.broadcast %cst_38 : f32 to vector<16x128xf32>
      %74 = arith.addf %73, %72 : vector<16x128xf32>
      %75 = arith.divf %73, %74 : vector<16x128xf32>
      %76 = vector.extract_strided_slice %53 {offsets = [0, 256], sizes = [16, 128], strides = [1, 1]} : vector<16x384xf32> to vector<16x128xf32>
      %77 = vector.extract_strided_slice %59 {offsets = [0, 256], sizes = [16, 128], strides = [1, 1]} : vector<16x384xf32> to vector<16x128xf32>
      %78 = arith.mulf %67, %77 : vector<16x128xf32>
      %79 = arith.addf %76, %78 : vector<16x128xf32>
      %80 = math.tanh %79 : vector<16x128xf32>
      %cst_39 = arith.constant 1.000000e+00 : f32
      %81 = vector.broadcast %cst_39 : f32 to vector<16x128xf32>
      %82 = arith.subf %81, %75 : vector<16x128xf32>
      %83 = arith.mulf %82, %80 : vector<16x128xf32>
      %84 = arith.mulf %75, %48 : vector<16x128xf32>
      %85 = arith.addf %83, %84 : vector<16x128xf32>
      %c0_40 = arith.constant 0 : index
      %c0_41 = arith.constant 0 : index
      %86 = vector.load %arg12[%c0_40, %c0_41] : memref<16x128xf32, #tpu.memory_space<vmem>>, vector<16x128xf32>
      tpu.vector_store %arg12[%c0_40, %c0_41], %85 {strides = array<i32>} : memref<16x128xf32, #tpu.memory_space<vmem>>, vector<16x128xf32>,
      %87 = arith.truncf %85 : vector<16x128xf32> to vector<16x128xbf16>
      %c0_42 = arith.constant 0 : index
      %c0_43 = arith.constant 0 : index
      %88 = vector.load %arg14[%c0_42, %c0_43] : memref<16x128xbf16, #tpu.memory_space<vmem>>, vector<16x128xbf16>
      tpu.vector_store %arg14[%c0_42, %c0_43], %87 {strides = array<i32>} : memref<16x128xbf16, #tpu.memory_space<vmem>>, vector<16x128xbf16>,
      %cst_44 = arith.constant -1.000000e+30 : f32
      %89 = vector.broadcast %cst_44 : f32 to vector<16x1xf32>
      %c0_45 = arith.constant 0 : index
      %c0_46 = arith.constant 0 : index
      %90 = vector.load %arg15[%c0_45, %c0_46] : memref<16x1xf32, #tpu.memory_space<vmem>>, vector<16x1xf32>
      tpu.vector_store %arg15[%c0_45, %c0_46], %89 {strides = array<i32>} : memref<16x1xf32, #tpu.memory_space<vmem>>, vector<16x1xf32>,
      %cst_47 = arith.constant 0.000000e+00 : f32
      %91 = vector.broadcast %cst_47 : f32 to vector<16x1xf32>
      %c0_48 = arith.constant 0 : index
      %c0_49 = arith.constant 0 : index
      %92 = vector.load %arg16[%c0_48, %c0_49] : memref<16x1xf32, #tpu.memory_space<vmem>>, vector<16x1xf32>
      tpu.vector_store %arg16[%c0_48, %c0_49], %91 {strides = array<i32>} : memref<16x1xf32, #tpu.memory_space<vmem>>, vector<16x1xf32>,
      %cst_50 = arith.constant 0.000000e+00 : f32
      %93 = vector.broadcast %cst_50 : f32 to vector<16x128xf32>
      %c0_51 = arith.constant 0 : index
      %c0_52 = arith.constant 0 : index
      %94 = vector.load %arg17[%c0_51, %c0_52] : memref<16x128xf32, #tpu.memory_space<vmem>>, vector<16x128xf32>
      tpu.vector_store %arg17[%c0_51, %c0_52], %93 {strides = array<i32>} : memref<16x128xf32, #tpu.memory_space<vmem>>, vector<16x128xf32>,
    } else {
    }
    %c0 = arith.constant 0 : index
    %c0_1 = arith.constant 0 : index
    %c0_2 = arith.constant 0 : index
    %3 = vector.load %arg4[%c0, %c0_1, %c0_2] : memref<16x16x128xbf16, #tpu.memory_space<vmem>>, vector<16x16x128xbf16>
    %c0_3 = arith.constant 0 : index
    %c0_4 = arith.constant 0 : index
    %4 = vector.load %arg14[%c0_3, %c0_4] : memref<16x128xbf16, #tpu.memory_space<vmem>>, vector<16x128xbf16>
    %5 = arith.extf %4 : vector<16x128xbf16> to vector<16x128xf32>
    %6 = vector.shape_cast %5 : vector<16x128xf32> to vector<16x1x128xf32>
    %7 = arith.extf %3 : vector<16x16x128xbf16> to vector<16x16x128xf32>
    %8 = vector.broadcast %6 : vector<16x1x128xf32> to vector<16x16x128xf32>
    %9 = arith.mulf %8, %7 : vector<16x16x128xf32>
    %cst = arith.constant dense<0.000000e+00> : vector<16x16xf32>
    %10 = vector.multi_reduction <add>, %9, %cst [2] : vector<16x16x128xf32> to vector<16x16xf32>
    %11 = tpu.iota {dimensions = array<i32: 1>} : vector<16x16xi32>
    %c16_i32 = arith.constant 16 : i32
    %12 = arith.muli %arg1, %c16_i32 : i32
    %13 = vector.broadcast %12 : i32 to vector<16x16xi32>
    %14 = arith.addi %11, %13 : vector<16x16xi32>
    %c8_i32 = arith.constant 8 : i32
    %15 = vector.broadcast %c8_i32 : i32 to vector<16x16xi32>
    %16 = arith.cmpi slt, %14, %15 : vector<16x16xi32>
    %cst_5 = arith.constant -1.000000e+30 : f32
    %17 = vector.broadcast %cst_5 : f32 to vector<16x16xf32>
    %18 = arith.select %16, %10, %17 : vector<16x16xi1>, vector<16x16xf32>
    %c0_6 = arith.constant 0 : index
    %c0_7 = arith.constant 0 : index
    %19 = vector.load %arg15[%c0_6, %c0_7] : memref<16x1xf32, #tpu.memory_space<vmem>>, vector<16x1xf32>
    %cst_8 = arith.constant dense<0xFF800000> : vector<16xf32>
    %20 = vector.multi_reduction <maximumf>, %18, %cst_8 [1] : vector<16x16xf32> to vector<16xf32>
    %21 = vector.shape_cast %20 : vector<16xf32> to vector<16x1xf32>
    %22 = arith.maximumf %19, %21 : vector<16x1xf32>
    %23 = arith.subf %19, %22 : vector<16x1xf32>
    %24 = math.exp %23 : vector<16x1xf32>
    %25 = vector.broadcast %22 : vector<16x1xf32> to vector<16x16xf32>
    %26 = arith.subf %18, %25 : vector<16x16xf32>
    %27 = math.exp %26 : vector<16x16xf32>
    %c0_9 = arith.constant 0 : index
    %c0_10 = arith.constant 0 : index
    %28 = vector.load %arg16[%c0_9, %c0_10] : memref<16x1xf32, #tpu.memory_space<vmem>>, vector<16x1xf32>
    %29 = arith.mulf %24, %28 : vector<16x1xf32>
    %cst_11 = arith.constant dense<0.000000e+00> : vector<16xf32>
    %30 = vector.multi_reduction <add>, %27, %cst_11 [1] : vector<16x16xf32> to vector<16xf32>
    %31 = vector.shape_cast %30 : vector<16xf32> to vector<16x1xf32>
    %32 = arith.addf %29, %31 : vector<16x1xf32>
    %c0_12 = arith.constant 0 : index
    %c0_13 = arith.constant 0 : index
    %33 = vector.load %arg16[%c0_12, %c0_13] : memref<16x1xf32, #tpu.memory_space<vmem>>, vector<16x1xf32>
    tpu.vector_store %arg16[%c0_12, %c0_13], %32 {strides = array<i32>} : memref<16x1xf32, #tpu.memory_space<vmem>>, vector<16x1xf32>,
    %c0_14 = arith.constant 0 : index
    %c0_15 = arith.constant 0 : index
    %34 = vector.load %arg17[%c0_14, %c0_15] : memref<16x128xf32, #tpu.memory_space<vmem>>, vector<16x128xf32>
    %35 = vector.broadcast %24 : vector<16x1xf32> to vector<16x128xf32>
    %36 = arith.mulf %35, %34 : vector<16x128xf32>
    %37 = arith.truncf %27 : vector<16x16xf32> to vector<16x16xbf16>
    %38 = vector.shape_cast %37 : vector<16x16xbf16> to vector<16x1x16xbf16>
    "tpu.trace_start"() <{level = 10 : i32, message = "bqs,bsh->bqh"}> : () -> ()
    %cst_16 = arith.constant dense<0.000000e+00> : vector<16x1x128xf32>
    %39 = tpu.matmul %38, %3, %cst_16 {dimension_numbers = #tpu.dot_dimension_numbers<[2], [1], [1], [2], [0, 0, 0, 1, 1, 2], [0], [0]>} : vector<16x1x16xbf16>, vector<16x16x128xbf16>, vector<16x1x128xf32> -> vector<16x1x128xf32>
    "tpu.trace_stop"() : () -> ()
    %40 = vector.shape_cast %39 : vector<16x1x128xf32> to vector<16x128xf32>
    %41 = arith.addf %36, %40 : vector<16x128xf32>
    %c0_17 = arith.constant 0 : index
    %c0_18 = arith.constant 0 : index
    %42 = vector.load %arg17[%c0_17, %c0_18] : memref<16x128xf32, #tpu.memory_space<vmem>>, vector<16x128xf32>
    tpu.vector_store %arg17[%c0_17, %c0_18], %41 {strides = array<i32>} : memref<16x128xf32, #tpu.memory_space<vmem>>, vector<16x128xf32>,
    %c0_19 = arith.constant 0 : index
    %c0_20 = arith.constant 0 : index
    %43 = vector.load %arg15[%c0_19, %c0_20] : memref<16x1xf32, #tpu.memory_space<vmem>>, vector<16x1xf32>
    tpu.vector_store %arg15[%c0_19, %c0_20], %22 {strides = array<i32>} : memref<16x1xf32, #tpu.memory_space<vmem>>, vector<16x1xf32>,
    %c0_i32_21 = arith.constant 0 : i32
    %44 = arith.cmpi eq, %arg1, %c0_i32_21 : i32
    %45 = arith.extui %44 : i1 to i32
    %c0_i32_22 = arith.constant 0 : i32
    %46 = arith.cmpi ne, %45, %c0_i32_22 : i32
    scf.if %46 {
      %c0_23 = arith.constant 0 : index
      %c0_24 = arith.constant 0 : index
      %47 = vector.load %arg17[%c0_23, %c0_24] : memref<16x128xf32, #tpu.memory_space<vmem>>, vector<16x128xf32>
      %c0_25 = arith.constant 0 : index
      %c0_26 = arith.constant 0 : index
      %48 = vector.load %arg16[%c0_25, %c0_26] : memref<16x1xf32, #tpu.memory_space<vmem>>, vector<16x1xf32>
      %49 = tpu.reciprocal %48 {approx = true} : vector<16x1xf32> -> vector<16x1xf32>
      %50 = vector.broadcast %49 : vector<16x1xf32> to vector<16x128xf32>
      %51 = arith.mulf %47, %50 : vector<16x128xf32>
      %c0_27 = arith.constant 0 : index
      %c0_28 = arith.constant 0 : index
      %52 = vector.load %arg14[%c0_27, %c0_28] : memref<16x128xbf16, #tpu.memory_space<vmem>>, vector<16x128xbf16>
      %c0_29 = arith.constant 0 : index
      %c0_30 = arith.constant 0 : index
      %53 = vector.load %arg9[%c0_29, %c0_30] : memref<128x128xbf16, #tpu.memory_space<vmem>>, vector<128x128xbf16>
      %cst_31 = arith.constant dense<0.000000e+00> : vector<16x128xf32>
      %54 = tpu.matmul %52, %53, %cst_31 {dimension_numbers = #tpu.dot_dimension_numbers<[1], [0], [0], [1], [0, 0, 1, 1], [], []>} : vector<16x128xbf16>, vector<128x128xbf16>, vector<16x128xf32> -> vector<16x128xf32>
      %55 = arith.truncf %51 : vector<16x128xf32> to vector<16x128xbf16>
      %c0_32 = arith.constant 0 : index
      %c0_33 = arith.constant 0 : index
      %56 = vector.load %arg10[%c0_32, %c0_33] : memref<128x128xbf16, #tpu.memory_space<vmem>>, vector<128x128xbf16>
      %cst_34 = arith.constant dense<0.000000e+00> : vector<16x128xf32>
      %57 = tpu.matmul %55, %56, %cst_34 {dimension_numbers = #tpu.dot_dimension_numbers<[1], [0], [0], [1], [0, 0, 1, 1], [], []>} : vector<16x128xbf16>, vector<128x128xbf16>, vector<16x128xf32> -> vector<16x128xf32>
      %58 = arith.addf %54, %57 : vector<16x128xf32>
      %c0_35 = arith.constant 0 : index
      %c0_36 = arith.constant 0 : index
      %59 = vector.load %arg11[%c0_35, %c0_36] : memref<1x128xf32, #tpu.memory_space<vmem>>, vector<1x128xf32>
      %60 = vector.broadcast %59 : vector<1x128xf32> to vector<16x128xf32>
      %61 = arith.addf %58, %60 : vector<16x128xf32>
      %62 = math.tanh %61 : vector<16x128xf32>
      %63 = arith.truncf %62 : vector<16x128xf32> to vector<16x128xbf16>
      %c0_37 = arith.constant 0 : index
      %c0_38 = arith.constant 0 : index
      %64 = vector.load %arg13[%c0_37, %c0_38] : memref<16x128xbf16, #tpu.memory_space<vmem>>, vector<16x128xbf16>
      tpu.vector_store %arg13[%c0_37, %c0_38], %63 {strides = array<i32>} : memref<16x128xbf16, #tpu.memory_space<vmem>>, vector<16x128xbf16>,
    } else {
    }
    return
  }
  func.func @transform_0(%arg0: i32, %arg1: i32) -> (i32, i32) {
    %c0_i32 = arith.constant 0 : i32
    %c0_i32_0 = arith.constant 0 : i32
    return %arg0, %c0_i32 : i32, i32
  }
  func.func @transform_1(%arg0: i32, %arg1: i32) -> (i32, i32) {
    %c0_i32 = arith.constant 0 : i32
    %c0_i32_0 = arith.constant 0 : i32
    return %arg0, %c0_i32 : i32, i32
  }
  func.func @transform_2(%arg0: i32, %arg1: i32) -> (i32, i32, i32) {
    %c0_i32 = arith.constant 0 : i32
    %c0_i32_0 = arith.constant 0 : i32
    return %arg0, %arg1, %c0_i32 : i32, i32, i32
  }
  func.func @transform_3(%arg0: i32, %arg1: i32) -> (i32, i32) {
    %c0_i32 = arith.constant 0 : i32
    %c0_i32_0 = arith.constant 0 : i32
    %c0_i32_1 = arith.constant 0 : i32
    return %c0_i32, %c0_i32_0 : i32, i32
  }
  func.func @transform_4(%arg0: i32, %arg1: i32) -> (i32, i32) {
    %c0_i32 = arith.constant 0 : i32
    %c0_i32_0 = arith.constant 0 : i32
    %c0_i32_1 = arith.constant 0 : i32
    return %c0_i32, %c0_i32_0 : i32, i32
  }
  func.func @transform_5(%arg0: i32, %arg1: i32) -> (i32, i32) {
    %c0_i32 = arith.constant 0 : i32
    %c0_i32_0 = arith.constant 0 : i32
    %c0_i32_1 = arith.constant 0 : i32
    return %c0_i32, %c0_i32_0 : i32, i32
  }
  func.func @transform_6(%arg0: i32, %arg1: i32) -> (i32, i32) {
    %c0_i32 = arith.constant 0 : i32
    %c0_i32_0 = arith.constant 0 : i32
    %c0_i32_1 = arith.constant 0 : i32
    return %c0_i32, %c0_i32_0 : i32, i32
  }
  func.func @transform_7(%arg0: i32, %arg1: i32) -> (i32, i32) {
    %c0_i32 = arith.constant 0 : i32
    %c0_i32_0 = arith.constant 0 : i32
    %c0_i32_1 = arith.constant 0 : i32
    return %c0_i32, %c0_i32_0 : i32, i32
  }
  func.func @transform_8(%arg0: i32, %arg1: i32) -> (i32, i32) {
    %c0_i32 = arith.constant 0 : i32
    %c0_i32_0 = arith.constant 0 : i32
    %c0_i32_1 = arith.constant 0 : i32
    return %c0_i32, %c0_i32_0 : i32, i32
  }
  func.func @transform_9(%arg0: i32, %arg1: i32) -> (i32, i32) {
    %c0_i32 = arith.constant 0 : i32
    %c0_i32_0 = arith.constant 0 : i32
    %c0_i32_1 = arith.constant 0 : i32
    return %c0_i32, %c0_i32_0 : i32, i32
  }
  func.func @transform_10(%arg0: i32, %arg1: i32) -> (i32, i32) {
    %c0_i32 = arith.constant 0 : i32
    %c0_i32_0 = arith.constant 0 : i32
    return %arg0, %c0_i32 : i32, i32
  }
  func.func @transform_11(%arg0: i32, %arg1: i32) -> (i32, i32) {
    %c0_i32 = arith.constant 0 : i32
    %c0_i32_0 = arith.constant 0 : i32
    return %arg0, %c0_i32 : i32, i32
  }
}

</mosaic_0001>

<llo_original>
// kernel: tpu_custom_call.1
$region0: #{tpu_custom_call.1}
  #allocation0 [shape = 'u32[]', space=smem, size = 0x4, offset = 0x4, fixed_abs, tag = 'smem constant byte address 0x4 - core index']
  #allocation1 [shape = 'u32[144,128]{1,0:T(1,128)}', space=vmem, size = 0x12000, scoped, tag = 'internal scratch']
  #allocation2 [shape = 'bf16[16,128]{1,0:T(8,128)(2,1)}', space=vmem, size = 0x1000, scoped, tag = 'scratch operand']
  #allocation3 [shape = 'f32[16,1]{1,0:T(8,128)}', space=vmem, size = 0x2000, scoped, tag = 'scratch operand']
  #allocation4 [shape = 'f32[16,1]{1,0:T(8,128)}', space=vmem, size = 0x2000, scoped, tag = 'scratch operand']
  #allocation5 [shape = 'f32[16,128]{1,0:T(8,128)}', space=vmem, size = 0x2000, scoped, tag = 'scratch operand']
  %s0 = inlined_call_operand.hbm [shape: bf16[16,128], index: 0, kind: input, shape index: {}]
  %s1 = inlined_call_operand.hbm [shape: f32[16,128], index: 1, kind: input, shape index: {}]
  %s2 = inlined_call_operand.hbm [shape: bf16[16,16,128], index: 2, kind: input, shape index: {}]
  %s3 = inlined_call_operand.hbm [shape: bf16[128,384], index: 3, kind: input, shape index: {}]
  %s4 = inlined_call_operand.hbm [shape: bf16[128,384], index: 4, kind: input, shape index: {}]
  %s5 = inlined_call_operand.vmem [shape: f32[1,384], index: 5, kind: input, shape index: {}]
  %s6 = inlined_call_operand.vmem [shape: f32[1,384], index: 6, kind: input, shape index: {}]
  %s7 = inlined_call_operand.hbm [shape: bf16[128,128], index: 7, kind: input, shape index: {}]
  %s8 = inlined_call_operand.hbm [shape: bf16[128,128], index: 8, kind: input, shape index: {}]
  %s9 = inlined_call_operand.vmem [shape: f32[1,128], index: 9, kind: input, shape index: {}]
  %s10 = inlined_call_operand.hbm [shape: f32[16,128], index: 10, kind: output, shape index: {0}]
  %s11 = inlined_call_operand.hbm [shape: bf16[16,128], index: 11, kind: output, shape index: {1}]
  %12 = xla_tuple %s10, %s11
  %s13 = sld [smem:[#allocation0]]
  $region94: #{tpu_custom_call.1} parent=0
    _
  %s15 = ssub.s32 1, %s13
  %s16 = scalar_select 0, %s15, %s13
  $region1: #{tpu_custom_call.1} parent=0
    #allocation6 [shape = 'u8[4096]{0}', space=vmem, size = 0x1000, scoped, tag = 'input window, operand 0, single buffered']
    #allocation7 [shape = 's32[1]{0}', space=sflag, size = 0x4, scoped, tag = 'scoped memory for tpu_custom_call.1']
    #allocation8 [shape = 's32[1]{0}', space=sflag, size = 0x4, scoped, tag = 'scoped memory for tpu_custom_call.1']
    #allocation9 [shape = 'u8[8192]{0}', space=vmem, size = 0x2000, scoped, tag = 'input window, operand 1, single buffered']
    #allocation10 [shape = 's32[1]{0}', space=sflag, size = 0x4, scoped, tag = 'scoped memory for tpu_custom_call.1']
    #allocation11 [shape = 'u8[65536]{0}', space=vmem, size = 0x10000, scoped, tag = 'input window, operand 2, single buffered']
    #allocation12 [shape = 'u8[98304]{0}', space=vmem, size = 0x18000, scoped, tag = 'input window, operand 3, single buffered']
    #allocation13 [shape = 's32[1]{0}', space=sflag, size = 0x4, scoped, tag = 'scoped memory for tpu_custom_call.1']
    #allocation14 [shape = 'u8[98304]{0}', space=vmem, size = 0x18000, scoped, tag = 'input window, operand 4, single buffered']
    #allocation15 [shape = 'u8[32768]{0}', space=vmem, size = 0x8000, scoped, tag = 'input window, operand 7, single buffered']
    #allocation16 [shape = 's32[1]{0}', space=sflag, size = 0x4, scoped, tag = 'scoped memory for tpu_custom_call.1']
    #allocation17 [shape = 'u8[32768]{0}', space=vmem, size = 0x8000, scoped, tag = 'input window, operand 8, single buffered']
    #allocation18 [shape = 'u8[8192]{0}', space=vmem, size = 0x2000, scoped, tag = 'output window, operand 0, single buffered']
    #allocation19 [shape = 'u8[4096]{0}', space=vmem, size = 0x1000, scoped, tag = 'output window, operand 1, single buffered']
    #allocation20 [shape = 's32[1]{0}', space=sflag, size = 0x4, scoped, tag = 'scoped memory for tpu_custom_call.1']
    %17 = vsyncpa [#allocation7], 0
    %18 = vsyncpa [#allocation10], 0
    %19 = vsyncpa [#allocation13], 0
    %20 = vsyncpa [#allocation16], 0
    %21 = vsyncpa [#allocation8], 0
    %22 = vsyncpa [#allocation20], 0
    // Predicated region
    $region2: #{tpu_custom_call.1} parent=1 // pred_check
      _
    $region3: #{tpu_custom_call.1} parent=1 // pred_check_branch
      %24 = sbr.rel (0) target = $region5
    $region4: #{tpu_custom_call.1} parent=1 // pred_region
      %s26 = ssub.s32 128, 128
      %27 = vsyncadd [#allocation7], %s26
      %s28 = sshll.u32 [#allocation6], 4
      %s29 = int_to_ptr.vmem [resolvable:$true] %s28
      %34 = dma.hbm_to_vmem [thread:$0]  %s0, 128, %s29, [#allocation7], 64, 64, 4
    $region5: #{tpu_custom_call.1} parent=1 // pred_fallthru
      _
    // Predicated region
    $region6: #{tpu_custom_call.1} parent=1 // pred_check
      _
    $region7: #{tpu_custom_call.1} parent=1 // pred_check_branch
      %36 = sbr.rel (0) target = $region9
    $region8: #{tpu_custom_call.1} parent=1 // pred_region
      %s38 = ssub.s32 256, 256
      %39 = vsyncadd [#allocation10], %s38
      %s40 = sshll.u32 [#allocation9], 4
      %s41 = int_to_ptr.vmem [resolvable:$true] %s40
      %46 = dma.hbm_to_vmem [thread:$0]  %s1, 256, %s41, [#allocation10], 128, 128, 8
    $region9: #{tpu_custom_call.1} parent=1 // pred_fallthru
      _
    // Predicated region
    $region10: #{tpu_custom_call.1} parent=1 // pred_check
      _
    $region11: #{tpu_custom_call.1} parent=1 // pred_check_branch
      %48 = sbr.rel (0) target = $region13
    $region12: #{tpu_custom_call.1} parent=1 // pred_region
      %s50 = ssub.s32 2048, 2048
      %51 = vsyncadd [#allocation10], %s50
      %s52 = sshll.u32 [#allocation11], 4
      %s53 = int_to_ptr.vmem [resolvable:$true] %s52
      %58 = dma.hbm_to_vmem [thread:$0]  %s2, 2048, %s53, [#allocation10], 64, 64, 4
    $region13: #{tpu_custom_call.1} parent=1 // pred_fallthru
      _
    // Predicated region
    $region14: #{tpu_custom_call.1} parent=1 // pred_check
      _
    $region15: #{tpu_custom_call.1} parent=1 // pred_check_branch
      %60 = sbr.rel (0) target = $region17
    $region16: #{tpu_custom_call.1} parent=1 // pred_region
      %s62 = ssub.s32 3072, 3072
      %63 = vsyncadd [#allocation13], %s62
      %s64 = sshll.u32 [#allocation12], 4
      %s65 = int_to_ptr.vmem [resolvable:$true] %s64
      %70 = dma.hbm_to_vmem [thread:$0]  %s3, 3072, %s65, [#allocation13], 192, 192, 12
    $region17: #{tpu_custom_call.1} parent=1 // pred_fallthru
      _
    // Predicated region
    $region18: #{tpu_custom_call.1} parent=1 // pred_check
      _
    $region19: #{tpu_custom_call.1} parent=1 // pred_check_branch
      %72 = sbr.rel (0) target = $region21
    $region20: #{tpu_custom_call.1} parent=1 // pred_region
      %s74 = ssub.s32 3072, 3072
      %75 = vsyncadd [#allocation13], %s74
      %s76 = sshll.u32 [#allocation14], 4
      %s77 = int_to_ptr.vmem [resolvable:$true] %s76
      %82 = dma.hbm_to_vmem [thread:$0]  %s4, 3072, %s77, [#allocation13], 192, 192, 12
    $region21: #{tpu_custom_call.1} parent=1 // pred_fallthru
      _
    // Predicated region
    $region22: #{tpu_custom_call.1} parent=1 // pred_check
      _
    $region23: #{tpu_custom_call.1} parent=1 // pred_check_branch
      %84 = sbr.rel (0) target = $region25
    $region24: #{tpu_custom_call.1} parent=1 // pred_region
      _
    $region25: #{tpu_custom_call.1} parent=1 // pred_fallthru
      _
    // Predicated region
    $region26: #{tpu_custom_call.1} parent=1 // pred_check
      _
    $region27: #{tpu_custom_call.1} parent=1 // pred_check_branch
      %86 = sbr.rel (0) target = $region29
    $region28: #{tpu_custom_call.1} parent=1 // pred_region
      _
    $region29: #{tpu_custom_call.1} parent=1 // pred_fallthru
      _
    // Predicated region
    $region30: #{tpu_custom_call.1} parent=1 // pred_check
      _
    $region31: #{tpu_custom_call.1} parent=1 // pred_check_branch
      %88 = sbr.rel (0) target = $region33
    $region32: #{tpu_custom_call.1} parent=1 // pred_region
      %s90 = ssub.s32 1024, 1024
      %91 = vsyncadd [#allocation16], %s90
      %s92 = sshll.u32 [#allocation15], 4
      %s93 = int_to_ptr.vmem [resolvable:$true] %s92
      %98 = dma.hbm_to_vmem [thread:$0]  %s7, 1024, %s93, [#allocation16], 64, 64, 4
    $region33: #{tpu_custom_call.1} parent=1 // pred_fallthru
      _
    // Predicated region
    $region34: #{tpu_custom_call.1} parent=1 // pred_check
      _
    $region35: #{tpu_custom_call.1} parent=1 // pred_check_branch
      %100 = sbr.rel (0) target = $region37
    $region36: #{tpu_custom_call.1} parent=1 // pred_region
      %s102 = ssub.s32 1024, 1024
      %103 = vsyncadd [#allocation16], %s102
      %s104 = sshll.u32 [#allocation17], 4
      %s105 = int_to_ptr.vmem [resolvable:$true] %s104
      %110 = dma.hbm_to_vmem [thread:$0]  %s8, 1024, %s105, [#allocation16], 64, 64, 4
    $region37: #{tpu_custom_call.1} parent=1 // pred_fallthru
      _
    // Predicated region
    $region38: #{tpu_custom_call.1} parent=1 // pred_check
      _
    $region39: #{tpu_custom_call.1} parent=1 // pred_check_branch
      %112 = sbr.rel (0) target = $region41
    $region40: #{tpu_custom_call.1} parent=1 // pred_region
      _
    $region41: #{tpu_custom_call.1} parent=1 // pred_fallthru
      _
    // Predicated region
    $region42: #{tpu_custom_call.1} parent=1 // pred_check
      _
    $region43: #{tpu_custom_call.1} parent=1 // pred_check_branch
      %114 = sbr.rel (0) target = $region45
    $region44: #{tpu_custom_call.1} parent=1 // pred_region
      %115 = dma.done [#allocation7], 128
    $region45: #{tpu_custom_call.1} parent=1 // pred_fallthru
      _
    // Predicated region
    $region46: #{tpu_custom_call.1} parent=1 // pred_check
      _
    $region47: #{tpu_custom_call.1} parent=1 // pred_check_branch
      %117 = sbr.rel (0) target = $region49
    $region48: #{tpu_custom_call.1} parent=1 // pred_region
      %118 = dma.done [#allocation10], 256
    $region49: #{tpu_custom_call.1} parent=1 // pred_fallthru
      _
    // Predicated region
    $region50: #{tpu_custom_call.1} parent=1 // pred_check
      _
    $region51: #{tpu_custom_call.1} parent=1 // pred_check_branch
      %120 = sbr.rel (0) target = $region53
    $region52: #{tpu_custom_call.1} parent=1 // pred_region
      %121 = dma.done [#allocation10], 2048
    $region53: #{tpu_custom_call.1} parent=1 // pred_fallthru
      _
    // Predicated region
    $region54: #{tpu_custom_call.1} parent=1 // pred_check
      _
    $region55: #{tpu_custom_call.1} parent=1 // pred_check_branch
      %123 = sbr.rel (0) target = $region57
    $region56: #{tpu_custom_call.1} parent=1 // pred_region
      %124 = dma.done [#allocation13], 3072
    $region57: #{tpu_custom_call.1} parent=1 // pred_fallthru
      _
    // Predicated region
    $region58: #{tpu_custom_call.1} parent=1 // pred_check
      _
    $region59: #{tpu_custom_call.1} parent=1 // pred_check_branch
      %126 = sbr.rel (0) target = $region61
    $region60: #{tpu_custom_call.1} parent=1 // pred_region
      %127 = dma.done [#allocation13], 3072
    $region61: #{tpu_custom_call.1} parent=1 // pred_fallthru
      _
    // Predicated region
    $region62: #{tpu_custom_call.1} parent=1 // pred_check
      _
    $region63: #{tpu_custom_call.1} parent=1 // pred_check_branch
      %129 = sbr.rel (0) target = $region65
    $region64: #{tpu_custom_call.1} parent=1 // pred_region
      %130 = dma.done [#allocation16], 1024
    $region65: #{tpu_custom_call.1} parent=1 // pred_fallthru
      _
    // Predicated region
    $region66: #{tpu_custom_call.1} parent=1 // pred_check
      _
    $region67: #{tpu_custom_call.1} parent=1 // pred_check_branch
      %132 = sbr.rel (0) target = $region69
    $region68: #{tpu_custom_call.1} parent=1 // pred_region
      %133 = dma.done [#allocation16], 1024
    $region69: #{tpu_custom_call.1} parent=1 // pred_fallthru
      _
    %p135 = scmp.eq.s32.totalorder 0, 0
    // Predicated region
    $region70: #{tpu_custom_call.1} parent=1 // pred_check
      %p136 = pneg %p135
    $region71: #{tpu_custom_call.1} parent=1 // pred_check_branch
      %138 = sbr.rel (%p136) target = $region73
    $region72: #{tpu_custom_call.1} parent=1 // pred_region
      %v139 = vld [vmem:[#allocation6] sm:$0xf]
      %v140 = vld [vmem:[#allocation6 + $0x4] sm:$0xf]
      %v141 = vld [vmem:[#allocation9] sm:$0xff]
      %v142 = vld [vmem:[#allocation9 + $0x8] sm:$0xff]
      %v143 = vld [vmem:[#allocation12] sm:$0xff]
      %v144 = vld [vmem:[#allocation12 + $0x8] sm:$0xf]
      %v145 = vld [vmem:[#allocation12 + $0xc] sm:$0xff]
      %v146 = vld [vmem:[#allocation12 + $0x14] sm:$0xf]
      %v147 = vld [vmem:[#allocation12 + $0x18] sm:$0xff]
      %v148 = vld [vmem:[#allocation12 + $0x20] sm:$0xf]
      %v149 = vld [vmem:[#allocation12 + $0x24] sm:$0xff]
      %v150 = vld [vmem:[#allocation12 + $0x2c] sm:$0xf]
      %v151 = vld [vmem:[#allocation12 + $0x30] sm:$0xff]
      %v152 = vld [vmem:[#allocation12 + $0x38] sm:$0xf]
      %v153 = vld [vmem:[#allocation12 + $0x3c] sm:$0xff]
      %v154 = vld [vmem:[#allocation12 + $0x44] sm:$0xf]
      %v155 = vld [vmem:[#allocation12 + $0x48] sm:$0xff]
      %v156 = vld [vmem:[#allocation12 + $0x50] sm:$0xf]
      %v157 = vld [vmem:[#allocation12 + $0x54] sm:$0xff]
      %v158 = vld [vmem:[#allocation12 + $0x5c] sm:$0xf]
      %v159 = vld [vmem:[#allocation12 + $0x60] sm:$0xff]
      %v160 = vld [vmem:[#allocation12 + $0x68] sm:$0xf]
      %v161 = vld [vmem:[#allocation12 + $0x6c] sm:$0xff]
      %v162 = vld [vmem:[#allocation12 + $0x74] sm:$0xf]
      %v163 = vld [vmem:[#allocation12 + $0x78] sm:$0xff]
      %v164 = vld [vmem:[#allocation12 + $0x80] sm:$0xf]
      %v165 = vld [vmem:[#allocation12 + $0x84] sm:$0xff]
      %v166 = vld [vmem:[#allocation12 + $0x8c] sm:$0xf]
      %v167 = vld [vmem:[#allocation12 + $0x90] sm:$0xff]
      %v168 = vld [vmem:[#allocation12 + $0x98] sm:$0xf]
      %v169 = vld [vmem:[#allocation12 + $0x9c] sm:$0xff]
      %v170 = vld [vmem:[#allocation12 + $0xa4] sm:$0xf]
      %v171 = vld [vmem:[#allocation12 + $0xa8] sm:$0xff]
      %v172 = vld [vmem:[#allocation12 + $0xb0] sm:$0xf]
      %v173 = vld [vmem:[#allocation12 + $0xb4] sm:$0xff]
      %v174 = vld [vmem:[#allocation12 + $0xbc] sm:$0xf]
      %v175 = vld [vmem:[%s5] sm:$0x7]
      %v177 = vlaneseq
      %v178 = vshrl.u32 %v177, 7
      %v179 = vsub.s32 0, %v178
      %v180 = vrot.slane %v175, %v179
      %v181 = vlaneseq
      %v182 = vshrl.u32 %v181, 7
      %v183 = vsub.s32 1, %v182
      %v184 = vrot.slane %v175, %v183
      %v185 = vlaneseq
      %v186 = vshrl.u32 %v185, 7
      %v187 = vsub.s32 2, %v186
      %v188 = vrot.slane %v175, %v187
      %v194 = vunpack.c.l.b16 %v139
      %v195 = vunpack.c.l.b16 %v140
      %v196 = vpack.c.b16 %v195, %v194
      %v230 = vunpack.c.l.b16 %v143
      %v231 = vunpack.c.h.b16 %v143
      %v232 = vunpack.c.l.b16 %v144
      %v233 = vunpack.c.l.b16 %v145
      %v234 = vunpack.c.h.b16 %v145
      %v235 = vunpack.c.l.b16 %v146
      %v236 = vunpack.c.l.b16 %v147
      %v237 = vunpack.c.h.b16 %v147
      %v238 = vunpack.c.l.b16 %v148
      %v239 = vunpack.c.l.b16 %v149
      %v240 = vunpack.c.h.b16 %v149
      %v241 = vunpack.c.l.b16 %v150
      %v242 = vunpack.c.l.b16 %v151
      %v243 = vunpack.c.h.b16 %v151
      %v244 = vunpack.c.l.b16 %v152
      %v245 = vunpack.c.l.b16 %v153
      %v246 = vunpack.c.h.b16 %v153
      %v247 = vunpack.c.l.b16 %v154
      %v248 = vunpack.c.l.b16 %v155
      %v249 = vunpack.c.h.b16 %v155
      %v250 = vunpack.c.l.b16 %v156
      %v251 = vunpack.c.l.b16 %v157
      %v252 = vunpack.c.h.b16 %v157
      %v253 = vunpack.c.l.b16 %v158
      %v254 = vunpack.c.l.b16 %v159
      %v255 = vunpack.c.h.b16 %v159
      %v256 = vunpack.c.l.b16 %v160
      %v257 = vunpack.c.l.b16 %v161
      %v258 = vunpack.c.h.b16 %v161
      %v259 = vunpack.c.l.b16 %v162
      %v260 = vunpack.c.l.b16 %v163
      %v261 = vunpack.c.h.b16 %v163
      %v262 = vunpack.c.l.b16 %v164
      %v263 = vunpack.c.l.b16 %v165
      %v264 = vunpack.c.h.b16 %v165
      %v265 = vunpack.c.l.b16 %v166
      %v266 = vunpack.c.l.b16 %v167
      %v267 = vunpack.c.h.b16 %v167
      %v268 = vunpack.c.l.b16 %v168
      %v269 = vunpack.c.l.b16 %v169
      %v270 = vunpack.c.h.b16 %v169
      %v271 = vunpack.c.l.b16 %v170
      %v272 = vunpack.c.l.b16 %v171
      %v273 = vunpack.c.h.b16 %v171
      %v274 = vunpack.c.l.b16 %v172
      %v275 = vunpack.c.l.b16 %v173
      %v276 = vunpack.c.h.b16 %v173
      %v277 = vunpack.c.l.b16 %v174
      %v278 = vpack.c.b16 %v233, %v230
      %v279 = vpack.c.b16 %v234, %v231
      %v280 = vpack.c.b16 %v235, %v232
      %v281 = vpack.c.b16 %v239, %v236
      %v282 = vpack.c.b16 %v240, %v237
      %v283 = vpack.c.b16 %v241, %v238
      %v284 = vpack.c.b16 %v245, %v242
      %v285 = vpack.c.b16 %v246, %v243
      %v286 = vpack.c.b16 %v247, %v244
      %v287 = vpack.c.b16 %v251, %v248
      %v288 = vpack.c.b16 %v252, %v249
      %v289 = vpack.c.b16 %v253, %v250
      %v290 = vpack.c.b16 %v257, %v254
      %v291 = vpack.c.b16 %v258, %v255
      %v292 = vpack.c.b16 %v259, %v256
      %v293 = vpack.c.b16 %v263, %v260
      %v294 = vpack.c.b16 %v264, %v261
      %v295 = vpack.c.b16 %v265, %v262
      %v296 = vpack.c.b16 %v269, %v266
      %v297 = vpack.c.b16 %v270, %v267
      %v298 = vpack.c.b16 %v271, %v268
      %v299 = vpack.c.b16 %v275, %v272
      %v300 = vpack.c.b16 %v276, %v273
      %v301 = vpack.c.b16 %v277, %v274
      %326 = vmatprep.subr.bf16.mxu0 %v300
      %327 = vmatpush1.bf16.msra.mxu0 %v299
      %328 = vmatprep.subr.bf16.mxu0 %v297
      %329 = vmatpush1.bf16.msra.mxu0 %v296
      %330 = vmatprep.subr.bf16.mxu0 %v294
      %331 = vmatpush1.bf16.msra.mxu0 %v293
      %332 = vmatprep.subr.bf16.mxu0 %v291
      %333 = vmatpush1.bf16.msra.mxu0 %v290
      %334 = vmatprep.subr.bf16.mxu0 %v288
      %335 = vmatpush1.bf16.msra.mxu0 %v287
      %336 = vmatprep.subr.bf16.mxu0 %v285
      %337 = vmatpush1.bf16.msra.mxu0 %v284
      %338 = vmatprep.subr.bf16.mxu0 %v282
      %339 = vmatpush1.bf16.msra.mxu0 %v281
      %340 = vmatprep.subr.bf16.mxu0 %v279
      %341 = vmatpush1.bf16.msra.mxu0 %v278
      %342 = vmatprep.subr.bf16.mxu0 0
      %343 = vmatpush2.bf16.msra.mxu0 0
      %344 = vmatprep.subr.bf16.mxu0 0
      %345 = vmatpush2.bf16.msra.mxu0 0
      %346 = vmatprep.subr.bf16.mxu0 0
      %347 = vmatpush2.bf16.msra.mxu0 0
      %348 = vmatprep.subr.bf16.mxu0 0
      %349 = vmatpush2.bf16.msra.mxu0 0
      %350 = vmatprep.subr.bf16.mxu0 0
      %351 = vmatpush2.bf16.msra.mxu0 0
      %352 = vmatprep.subr.bf16.mxu0 0
      %353 = vmatpush2.bf16.msra.mxu0 0
      %354 = vmatprep.subr.bf16.mxu0 0
      %355 = vmatpush2.bf16.msra.mxu0 0
      %356 = vmatprep.subr.bf16.mxu0 0
      %357 = vmatpush2.bf16.msra.mxu0 0
      %358 = vmatprep.mubr.bf16.mxu0 0
      %359 = vmatmul.mubr.bf16.gmra.mxu0 %v196
      %v360 = vpop.f32.mrf.mxu0
      %v361 = vadd.f32 %v180, %v360
      %v362 = vpop.f32.mrf.mxu0
      %v363 = vadd.f32 %v184, %v362
      %v364 = vpop.f32.mrf.mxu0
      %v365 = vadd.f32 %v180, %v364
      %v366 = vpop.f32.mrf.mxu0
      %v367 = vadd.f32 %v184, %v366
      %368 = vdwg.mxu0
      %369 = vmatprep.subr.bf16.mxu0 0
      %370 = vmatpush1.bf16.msra.mxu0 %v301
      %371 = vmatprep.subr.bf16.mxu0 0
      %372 = vmatpush1.bf16.msra.mxu0 %v298
      %373 = vmatprep.subr.bf16.mxu0 0
      %374 = vmatpush1.bf16.msra.mxu0 %v295
      %375 = vmatprep.subr.bf16.mxu0 0
      %376 = vmatpush1.bf16.msra.mxu0 %v292
      %377 = vmatprep.subr.bf16.mxu0 0
      %378 = vmatpush1.bf16.msra.mxu0 %v289
      %379 = vmatprep.subr.bf16.mxu0 0
      %380 = vmatpush1.bf16.msra.mxu0 %v286
      %381 = vmatprep.subr.bf16.mxu0 0
      %382 = vmatpush1.bf16.msra.mxu0 %v283
      %383 = vmatprep.subr.bf16.mxu0 0
      %384 = vmatpush1.bf16.msra.mxu0 %v280
      %385 = vmatprep.subr.bf16.mxu0 0
      %386 = vmatpush2.bf16.msra.mxu0 0
      %387 = vmatprep.subr.bf16.mxu0 0
      %388 = vmatpush2.bf16.msra.mxu0 0
      %389 = vmatprep.subr.bf16.mxu0 0
      %390 = vmatpush2.bf16.msra.mxu0 0
      %391 = vmatprep.subr.bf16.mxu0 0
      %392 = vmatpush2.bf16.msra.mxu0 0
      %393 = vmatprep.subr.bf16.mxu0 0
      %394 = vmatpush2.bf16.msra.mxu0 0
      %395 = vmatprep.subr.bf16.mxu0 0
      %396 = vmatpush2.bf16.msra.mxu0 0
      %397 = vmatprep.subr.bf16.mxu0 0
      %398 = vmatpush2.bf16.msra.mxu0 0
      %399 = vmatprep.subr.bf16.mxu0 0
      %400 = vmatpush2.bf16.msra.mxu0 0
      %401 = vmatprep.mubr.bf16.mxu0 0
      %402 = vmatmul.mubr.bf16.gmra.mxu0 %v196
      %v403 = vpop.f32.mrf.mxu0
      %v404 = vadd.f32 %v188, %v403
      %v405 = vpop.f32.mrf.mxu0
      %v406 = vpop.f32.mrf.mxu0
      %v407 = vadd.f32 %v188, %v406
      %v408 = vpop.f32.mrf.mxu0
      %409 = vdwg.mxu0
      %v410 = vpack.c.bf16 %v142, %v141
      %v411 = vld [vmem:[#allocation14] sm:$0xff]
      %v412 = vld [vmem:[#allocation14 + $0x8] sm:$0xf]
      %v413 = vld [vmem:[#allocation14 + $0xc] sm:$0xff]
      %v414 = vld [vmem:[#allocation14 + $0x14] sm:$0xf]
      %v415 = vld [vmem:[#allocation14 + $0x18] sm:$0xff]
      %v416 = vld [vmem:[#allocation14 + $0x20] sm:$0xf]
      %v417 = vld [vmem:[#allocation14 + $0x24] sm:$0xff]
      %v418 = vld [vmem:[#allocation14 + $0x2c] sm:$0xf]
      %v419 = vld [vmem:[#allocation14 + $0x30] sm:$0xff]
      %v420 = vld [vmem:[#allocation14 + $0x38] sm:$0xf]
      %v421 = vld [vmem:[#allocation14 + $0x3c] sm:$0xff]
      %v422 = vld [vmem:[#allocation14 + $0x44] sm:$0xf]
      %v423 = vld [vmem:[#allocation14 + $0x48] sm:$0xff]
      %v424 = vld [vmem:[#allocation14 + $0x50] sm:$0xf]
      %v425 = vld [vmem:[#allocation14 + $0x54] sm:$0xff]
      %v426 = vld [vmem:[#allocation14 + $0x5c] sm:$0xf]
      %v427 = vld [vmem:[#allocation14 + $0x60] sm:$0xff]
      %v428 = vld [vmem:[#allocation14 + $0x68] sm:$0xf]
      %v429 = vld [vmem:[#allocation14 + $0x6c] sm:$0xff]
      %v430 = vld [vmem:[#allocation14 + $0x74] sm:$0xf]
      %v431 = vld [vmem:[#allocation14 + $0x78] sm:$0xff]
      %v432 = vld [vmem:[#allocation14 + $0x80] sm:$0xf]
      %v433 = vld [vmem:[#allocation14 + $0x84] sm:$0xff]
      %v434 = vld [vmem:[#allocation14 + $0x8c] sm:$0xf]
      %v435 = vld [vmem:[#allocation14 + $0x90] sm:$0xff]
      %v436 = vld [vmem:[#allocation14 + $0x98] sm:$0xf]
      %v437 = vld [vmem:[#allocation14 + $0x9c] sm:$0xff]
      %v438 = vld [vmem:[#allocation14 + $0xa4] sm:$0xf]
      %v439 = vld [vmem:[#allocation14 + $0xa8] sm:$0xff]
      %v440 = vld [vmem:[#allocation14 + $0xb0] sm:$0xf]
      %v441 = vld [vmem:[#allocation14 + $0xb4] sm:$0xff]
      %v442 = vld [vmem:[#allocation14 + $0xbc] sm:$0xf]
      %v443 = vld [vmem:[%s6] sm:$0x7]
      %v445 = vlaneseq
      %v446 = vshrl.u32 %v445, 7
      %v447 = vsub.s32 0, %v446
      %v448 = vrot.slane %v443, %v447
      %v449 = vlaneseq
      %v450 = vshrl.u32 %v449, 7
      %v451 = vsub.s32 1, %v450
      %v452 = vrot.slane %v443, %v451
      %v453 = vlaneseq
      %v454 = vshrl.u32 %v453, 7
      %v455 = vsub.s32 2, %v454
      %v456 = vrot.slane %v443, %v455
      %v492 = vunpack.c.l.b16 %v411
      %v493 = vunpack.c.h.b16 %v411
      %v494 = vunpack.c.l.b16 %v412
      %v495 = vunpack.c.l.b16 %v413
      %v496 = vunpack.c.h.b16 %v413
      %v497 = vunpack.c.l.b16 %v414
      %v498 = vunpack.c.l.b16 %v415
      %v499 = vunpack.c.h.b16 %v415
      %v500 = vunpack.c.l.b16 %v416
      %v501 = vunpack.c.l.b16 %v417
      %v502 = vunpack.c.h.b16 %v417
      %v503 = vunpack.c.l.b16 %v418
      %v504 = vunpack.c.l.b16 %v419
      %v505 = vunpack.c.h.b16 %v419
      %v506 = vunpack.c.l.b16 %v420
      %v507 = vunpack.c.l.b16 %v421
      %v508 = vunpack.c.h.b16 %v421
      %v509 = vunpack.c.l.b16 %v422
      %v510 = vunpack.c.l.b16 %v423
      %v511 = vunpack.c.h.b16 %v423
      %v512 = vunpack.c.l.b16 %v424
      %v513 = vunpack.c.l.b16 %v425
      %v514 = vunpack.c.h.b16 %v425
      %v515 = vunpack.c.l.b16 %v426
      %v516 = vunpack.c.l.b16 %v427
      %v517 = vunpack.c.h.b16 %v427
      %v518 = vunpack.c.l.b16 %v428
      %v519 = vunpack.c.l.b16 %v429
      %v520 = vunpack.c.h.b16 %v429
      %v521 = vunpack.c.l.b16 %v430
      %v522 = vunpack.c.l.b16 %v431
      %v523 = vunpack.c.h.b16 %v431
      %v524 = vunpack.c.l.b16 %v432
      %v525 = vunpack.c.l.b16 %v433
      %v526 = vunpack.c.h.b16 %v433
      %v527 = vunpack.c.l.b16 %v434
      %v528 = vunpack.c.l.b16 %v435
      %v529 = vunpack.c.h.b16 %v435
      %v530 = vunpack.c.l.b16 %v436
      %v531 = vunpack.c.l.b16 %v437
      %v532 = vunpack.c.h.b16 %v437
      %v533 = vunpack.c.l.b16 %v438
      %v534 = vunpack.c.l.b16 %v439
      %v535 = vunpack.c.h.b16 %v439
      %v536 = vunpack.c.l.b16 %v440
      %v537 = vunpack.c.l.b16 %v441
      %v538 = vunpack.c.h.b16 %v441
      %v539 = vunpack.c.l.b16 %v442
      %v540 = vpack.c.b16 %v495, %v492
      %v541 = vpack.c.b16 %v496, %v493
      %v542 = vpack.c.b16 %v497, %v494
      %v543 = vpack.c.b16 %v501, %v498
      %v544 = vpack.c.b16 %v502, %v499
      %v545 = vpack.c.b16 %v503, %v500
      %v546 = vpack.c.b16 %v507, %v504
      %v547 = vpack.c.b16 %v508, %v505
      %v548 = vpack.c.b16 %v509, %v506
      %v549 = vpack.c.b16 %v513, %v510
      %v550 = vpack.c.b16 %v514, %v511
      %v551 = vpack.c.b16 %v515, %v512
      %v552 = vpack.c.b16 %v519, %v516
      %v553 = vpack.c.b16 %v520, %v517
      %v554 = vpack.c.b16 %v521, %v518
      %v555 = vpack.c.b16 %v525, %v522
      %v556 = vpack.c.b16 %v526, %v523
      %v557 = vpack.c.b16 %v527, %v524
      %v558 = vpack.c.b16 %v531, %v528
      %v559 = vpack.c.b16 %v532, %v529
      %v560 = vpack.c.b16 %v533, %v530
      %v561 = vpack.c.b16 %v537, %v534
      %v562 = vpack.c.b16 %v538, %v535
      %v563 = vpack.c.b16 %v539, %v536
      %588 = vmatprep.subr.bf16.mxu0 %v562
      %589 = vmatpush1.bf16.msra.mxu0 %v561
      %590 = vmatprep.subr.bf16.mxu0 %v559
      %591 = vmatpush1.bf16.msra.mxu0 %v558
      %592 = vmatprep.subr.bf16.mxu0 %v556
      %593 = vmatpush1.bf16.msra.mxu0 %v555
      %594 = vmatprep.subr.bf16.mxu0 %v553
      %595 = vmatpush1.bf16.msra.mxu0 %v552
      %596 = vmatprep.subr.bf16.mxu0 %v550
      %597 = vmatpush1.bf16.msra.mxu0 %v549
      %598 = vmatprep.subr.bf16.mxu0 %v547
      %599 = vmatpush1.bf16.msra.mxu0 %v546
      %600 = vmatprep.subr.bf16.mxu0 %v544
      %601 = vmatpush1.bf16.msra.mxu0 %v543
      %602 = vmatprep.subr.bf16.mxu0 %v541
      %603 = vmatpush1.bf16.msra.mxu0 %v540
      %604 = vmatprep.subr.bf16.mxu0 0
      %605 = vmatpush2.bf16.msra.mxu0 0
      %606 = vmatprep.subr.bf16.mxu0 0
      %607 = vmatpush2.bf16.msra.mxu0 0
      %608 = vmatprep.subr.bf16.mxu0 0
      %609 = vmatpush2.bf16.msra.mxu0 0
      %610 = vmatprep.subr.bf16.mxu0 0
      %611 = vmatpush2.bf16.msra.mxu0 0
      %612 = vmatprep.subr.bf16.mxu0 0
      %613 = vmatpush2.bf16.msra.mxu0 0
      %614 = vmatprep.subr.bf16.mxu0 0
      %615 = vmatpush2.bf16.msra.mxu0 0
      %616 = vmatprep.subr.bf16.mxu0 0
      %617 = vmatpush2.bf16.msra.mxu0 0
      %618 = vmatprep.subr.bf16.mxu0 0
      %619 = vmatpush2.bf16.msra.mxu0 0
      %620 = vmatprep.mubr.bf16.mxu0 0
      %621 = vmatmul.mubr.bf16.gmra.mxu0 %v410
      %v622 = vpop.f32.mrf.mxu0
      %v623 = vadd.f32 %v448, %v622
      %v624 = vpop.f32.mrf.mxu0
      %v625 = vadd.f32 %v452, %v624
      %v626 = vpop.f32.mrf.mxu0
      %v627 = vadd.f32 %v448, %v626
      %v628 = vpop.f32.mrf.mxu0
      %v629 = vadd.f32 %v452, %v628
      %630 = vdwg.mxu0
      %631 = vmatprep.subr.bf16.mxu0 0
      %632 = vmatpush1.bf16.msra.mxu0 %v563
      %633 = vmatprep.subr.bf16.mxu0 0
      %634 = vmatpush1.bf16.msra.mxu0 %v560
      %635 = vmatprep.subr.bf16.mxu0 0
      %636 = vmatpush1.bf16.msra.mxu0 %v557
      %637 = vmatprep.subr.bf16.mxu0 0
      %638 = vmatpush1.bf16.msra.mxu0 %v554
      %639 = vmatprep.subr.bf16.mxu0 0
      %640 = vmatpush1.bf16.msra.mxu0 %v551
      %641 = vmatprep.subr.bf16.mxu0 0
      %642 = vmatpush1.bf16.msra.mxu0 %v548
      %643 = vmatprep.subr.bf16.mxu0 0
      %644 = vmatpush1.bf16.msra.mxu0 %v545
      %645 = vmatprep.subr.bf16.mxu0 0
      %646 = vmatpush1.bf16.msra.mxu0 %v542
      %647 = vmatprep.subr.bf16.mxu0 0
      %648 = vmatpush2.bf16.msra.mxu0 0
      %649 = vmatprep.subr.bf16.mxu0 0
      %650 = vmatpush2.bf16.msra.mxu0 0
      %651 = vmatprep.subr.bf16.mxu0 0
      %652 = vmatpush2.bf16.msra.mxu0 0
      %653 = vmatprep.subr.bf16.mxu0 0
      %654 = vmatpush2.bf16.msra.mxu0 0
      %655 = vmatprep.subr.bf16.mxu0 0
      %656 = vmatpush2.bf16.msra.mxu0 0
      %657 = vmatprep.subr.bf16.mxu0 0
      %658 = vmatpush2.bf16.msra.mxu0 0
      %659 = vmatprep.subr.bf16.mxu0 0
      %660 = vmatpush2.bf16.msra.mxu0 0
      %661 = vmatprep.subr.bf16.mxu0 0
      %662 = vmatpush2.bf16.msra.mxu0 0
      %663 = vmatprep.mubr.bf16.mxu0 0
      %664 = vmatmul.mubr.bf16.gmra.mxu0 %v410
      %v665 = vpop.f32.mrf.mxu0
      %v666 = vadd.f32 %v456, %v665
      %v667 = vpop.f32.mrf.mxu0
      %v668 = vpop.f32.mrf.mxu0
      %v669 = vadd.f32 %v456, %v668
      %v670 = vpop.f32.mrf.mxu0
      %671 = vdwg.mxu0
      %v672 = vadd.f32 %v361, %v623
      %v673 = vadd.f32 %v365, %v627
      %v674 = vxor.u32 %v672, 2147483648
      %v675 = vxor.u32 %v673, 2147483648
      %v676 = vmul.f32 %v674, 1.442695
      %v677 = vpow.pop %v676
      %v678 = vmul.f32 %v675, 1.442695
      %v679 = vpow.pop %v678
      %v680 = vadd.f32 %v677, 1.0
      %v681 = vadd.f32 %v679, 1.0
      %v682 = vrcp.pop %v680
      %v683 = vmul.f32 1.0, %v682
      %v684 = vrcp.pop %v681
      %v685 = vmul.f32 1.0, %v684
      %v686 = vadd.f32 %v363, %v625
      %v687 = vadd.f32 %v367, %v629
      %v688 = vxor.u32 %v686, 2147483648
      %v689 = vxor.u32 %v687, 2147483648
      %v690 = vmul.f32 %v688, 1.442695
      %v691 = vpow.pop %v690
      %v692 = vmul.f32 %v689, 1.442695
      %v693 = vpow.pop %v692
      %v694 = vadd.f32 %v691, 1.0
      %v695 = vadd.f32 %v693, 1.0
      %v696 = vrcp.pop %v694
      %v697 = vmul.f32 1.0, %v696
      %v698 = vrcp.pop %v695
      %v699 = vmul.f32 1.0, %v698
      %v700 = vmul.f32 %v683, %v666
      %v701 = vmul.f32 %v685, %v669
      %v702 = vadd.f32 %v404, %v700
      %v703 = vadd.f32 %v407, %v701
      %v704 = vtanh.pop %v702
      %v705 = vtanh.pop %v703
      %v706 = vsub.f32 1.0, %v697
      %v707 = vsub.f32 1.0, %v699
      %v708 = vmul.f32 %v706, %v704
      %v709 = vmul.f32 %v707, %v705
      %v710 = vmul.f32 %v697, %v141
      %v711 = vmul.f32 %v699, %v142
      %v712 = vadd.f32 %v708, %v710
      %v713 = vadd.f32 %v709, %v711
      %714 = vst [vmem:[#allocation18] sm:$0xff] %v712
      %715 = vst [vmem:[#allocation18 + $0x8] sm:$0xff] %v713
      %v716 = vpack.c.bf16 %v713, %v712
      %v718 = vunpack.c.l.b16 %v716
      %v719 = vunpack.c.h.b16 %v716
      %v720 = vpack.c.b16 %v718, %v718
      %v721 = vpack.c.b16 %v719, %v719
      %724 = vst [vmem:[#allocation2] sm:$0xf] %v720
      %725 = vst [vmem:[#allocation2 + $0x4] sm:$0xf] %v721
      %vm726 = vcmask 7168
      %727 = vst.msk [vmem:[#allocation3] sm:$0xff] %vm726, -1e+30
      %728 = vst.msk [vmem:[#allocation3 + $0x8] sm:$0xff] %vm726, -1e+30
      %729 = vst.msk [vmem:[#allocation4] sm:$0xff] %vm726, 0.0
      %730 = vst.msk [vmem:[#allocation4 + $0x8] sm:$0xff] %vm726, 0.0
      %731 = vst [vmem:[#allocation5] sm:$0xff] 0.0
      %732 = vst [vmem:[#allocation5 + $0x8] sm:$0xff] 0.0
    $region73: #{tpu_custom_call.1} parent=1 // pred_fallthru
      _
    %v733 = vld [vmem:[#allocation11] sm:$0xf]
    %v734 = vld [vmem:[#allocation11 + $0x4] sm:$0xf]
    %v735 = vld [vmem:[#allocation11 + $0x8] sm:$0xf]
    %v736 = vld [vmem:[#allocation11 + $0xc] sm:$0xf]
    %v737 = vld [vmem:[#allocation11 + $0x10] sm:$0xf]
    %v738 = vld [vmem:[#allocation11 + $0x14] sm:$0xf]
    %v739 = vld [vmem:[#allocation11 + $0x18] sm:$0xf]
    %v740 = vld [vmem:[#allocation11 + $0x1c] sm:$0xf]
    %v741 = vld [vmem:[#allocation11 + $0x20] sm:$0xf]
    %v742 = vld [vmem:[#allocation11 + $0x24] sm:$0xf]
    %v743 = vld [vmem:[#allocation11 + $0x28] sm:$0xf]
    %v744 = vld [vmem:[#allocation11 + $0x2c] sm:$0xf]
    %v745 = vld [vmem:[#allocation11 + $0x30] sm:$0xf]
    %v746 = vld [vmem:[#allocation11 + $0x34] sm:$0xf]
    %v747 = vld [vmem:[#allocation11 + $0x38] sm:$0xf]
    %v748 = vld [vmem:[#allocation11 + $0x3c] sm:$0xf]
    %v749 = vld [vmem:[#allocation11 + $0x40] sm:$0xf]
    %v750 = vld [vmem:[#allocation11 + $0x44] sm:$0xf]
    %v751 = vld [vmem:[#allocation11 + $0x48] sm:$0xf]
    %v752 = vld [vmem:[#allocation11 + $0x4c] sm:$0xf]
    %v753 = vld [vmem:[#allocation11 + $0x50] sm:$0xf]
    %v754 = vld [vmem:[#allocation11 + $0x54] sm:$0xf]
    %v755 = vld [vmem:[#allocation11 + $0x58] sm:$0xf]
    %v756 = vld [vmem:[#allocation11 + $0x5c] sm:$0xf]
    %v757 = vld [vmem:[#allocation11 + $0x60] sm:$0xf]
    %v758 = vld [vmem:[#allocation11 + $0x64] sm:$0xf]
    %v759 = vld [vmem:[#allocation11 + $0x68] sm:$0xf]
    %v760 = vld [vmem:[#allocation11 + $0x6c] sm:$0xf]
    %v761 = vld [vmem:[#allocation11 + $0x70] sm:$0xf]
    %v762 = vld [vmem:[#allocation11 + $0x74] sm:$0xf]
    %v763 = vld [vmem:[#allocation11 + $0x78] sm:$0xf]
    %v764 = vld [vmem:[#allocation11 + $0x7c] sm:$0xf]
    %v765 = vld [vmem:[#allocation2] sm:$0xf]
    %v766 = vld [vmem:[#allocation2 + $0x4] sm:$0xf]
    %v767 = vunpack.c.l.bf16 %v765
    %v768 = vunpack.c.l.bf16 %v766
    %v771 = vcombine.high %v767, %v767
    %v773 = vunpack.c.l.s4 1966171168
    %v774 = vunpack.c.0.s8 %v773
    %v775 = vlaneseq
    %v776 = vshrl.u32 %v775, 7
    %v777 = vsub.s32 %v774, %v776
    %v778 = vrot.slane %v767, %v777
    %v780 = vunpack.c.l.s4 1966171168
    %v781 = vunpack.c.0.s8 %v780
    %v782 = vlaneseq
    %v783 = vshrl.u32 %v782, 7
    %v784 = vsub.s32 %v781, %v783
    %v785 = vrot.slane %v771, %v784
    %v786 = vcombine.high %v778, %v778
    %v787 = vcombine.high %v785, %v785
    %v789 = vunpack.c.l.s4 1966171168
    %v790 = vunpack.c.0.s8 %v789
    %v791 = vlaneseq
    %v792 = vshrl.u32 %v791, 7
    %v793 = vsub.s32 %v790, %v792
    %v794 = vrot.slane %v778, %v793
    %v796 = vunpack.c.l.s4 1966171168
    %v797 = vunpack.c.0.s8 %v796
    %v798 = vlaneseq
    %v799 = vshrl.u32 %v798, 7
    %v800 = vsub.s32 %v797, %v799
    %v801 = vrot.slane %v785, %v800
    %v803 = vunpack.c.l.s4 1966171168
    %v804 = vunpack.c.0.s8 %v803
    %v805 = vlaneseq
    %v806 = vshrl.u32 %v805, 7
    %v807 = vsub.s32 %v804, %v806
    %v808 = vrot.slane %v786, %v807
    %v810 = vunpack.c.l.s4 1966171168
    %v811 = vunpack.c.0.s8 %v810
    %v812 = vlaneseq
    %v813 = vshrl.u32 %v812, 7
    %v814 = vsub.s32 %v811, %v813
    %v815 = vrot.slane %v787, %v814
    %v816 = vcombine.high %v794, %v794
    %v817 = vcombine.high %v801, %v801
    %v818 = vcombine.high %v808, %v808
    %v819 = vcombine.high %v815, %v815
    %v820 = vcombine.high %v768, %v768
    %v822 = vunpack.c.l.s4 1966171168
    %v823 = vunpack.c.0.s8 %v822
    %v824 = vlaneseq
    %v825 = vshrl.u32 %v824, 7
    %v826 = vsub.s32 %v823, %v825
    %v827 = vrot.slane %v768, %v826
    %v829 = vunpack.c.l.s4 1966171168
    %v830 = vunpack.c.0.s8 %v829
    %v831 = vlaneseq
    %v832 = vshrl.u32 %v831, 7
    %v833 = vsub.s32 %v830, %v832
    %v834 = vrot.slane %v820, %v833
    %v835 = vcombine.high %v827, %v827
    %v836 = vcombine.high %v834, %v834
    %v838 = vunpack.c.l.s4 1966171168
    %v839 = vunpack.c.0.s8 %v838
    %v840 = vlaneseq
    %v841 = vshrl.u32 %v840, 7
    %v842 = vsub.s32 %v839, %v841
    %v843 = vrot.slane %v827, %v842
    %v845 = vunpack.c.l.s4 1966171168
    %v846 = vunpack.c.0.s8 %v845
    %v847 = vlaneseq
    %v848 = vshrl.u32 %v847, 7
    %v849 = vsub.s32 %v846, %v848
    %v850 = vrot.slane %v834, %v849
    %v852 = vunpack.c.l.s4 1966171168
    %v853 = vunpack.c.0.s8 %v852
    %v854 = vlaneseq
    %v855 = vshrl.u32 %v854, 7
    %v856 = vsub.s32 %v853, %v855
    %v857 = vrot.slane %v835, %v856
    %v859 = vunpack.c.l.s4 1966171168
    %v860 = vunpack.c.0.s8 %v859
    %v861 = vlaneseq
    %v862 = vshrl.u32 %v861, 7
    %v863 = vsub.s32 %v860, %v862
    %v864 = vrot.slane %v836, %v863
    %v865 = vcombine.high %v843, %v843
    %v866 = vcombine.high %v850, %v850
    %v867 = vcombine.high %v857, %v857
    %v868 = vcombine.high %v864, %v864
    %v869 = vunpack.c.l.bf16 %v733
    %v870 = vunpack.c.l.bf16 %v734
    %v871 = vunpack.c.l.bf16 %v735
    %v872 = vunpack.c.l.bf16 %v736
    %v873 = vunpack.c.l.bf16 %v737
    %v874 = vunpack.c.l.bf16 %v738
    %v875 = vunpack.c.l.bf16 %v739
    %v876 = vunpack.c.l.bf16 %v740
    %v877 = vunpack.c.l.bf16 %v741
    %v878 = vunpack.c.l.bf16 %v742
    %v879 = vunpack.c.l.bf16 %v743
    %v880 = vunpack.c.l.bf16 %v744
    %v881 = vunpack.c.l.bf16 %v745
    %v882 = vunpack.c.l.bf16 %v746
    %v883 = vunpack.c.l.bf16 %v747
    %v884 = vunpack.c.l.bf16 %v748
    %v885 = vunpack.c.l.bf16 %v749
    %v886 = vunpack.c.l.bf16 %v750
    %v887 = vunpack.c.l.bf16 %v751
    %v888 = vunpack.c.l.bf16 %v752
    %v889 = vunpack.c.l.bf16 %v753
    %v890 = vunpack.c.l.bf16 %v754
    %v891 = vunpack.c.l.bf16 %v755
    %v892 = vunpack.c.l.bf16 %v756
    %v893 = vunpack.c.l.bf16 %v757
    %v894 = vunpack.c.l.bf16 %v758
    %v895 = vunpack.c.l.bf16 %v759
    %v896 = vunpack.c.l.bf16 %v760
    %v897 = vunpack.c.l.bf16 %v761
    %v898 = vunpack.c.l.bf16 %v762
    %v899 = vunpack.c.l.bf16 %v763
    %v900 = vunpack.c.l.bf16 %v764
    %v901 = vlaneseq
    %v902 = vshrl.u32 %v901, 7
    %v903 = vsub.s32 0, %v902
    %v904 = vrot.slane %v794, %v903
    %v905 = vlaneseq
    %v906 = vshrl.u32 %v905, 7
    %v907 = vsub.s32 0, %v906
    %v908 = vrot.slane %v808, %v907
    %v909 = vlaneseq
    %v910 = vshrl.u32 %v909, 7
    %v911 = vsub.s32 0, %v910
    %v912 = vrot.slane %v816, %v911
    %v913 = vlaneseq
    %v914 = vshrl.u32 %v913, 7
    %v915 = vsub.s32 0, %v914
    %v916 = vrot.slane %v818, %v915
    %v917 = vlaneseq
    %v918 = vshrl.u32 %v917, 7
    %v919 = vsub.s32 0, %v918
    %v920 = vrot.slane %v801, %v919
    %v921 = vlaneseq
    %v922 = vshrl.u32 %v921, 7
    %v923 = vsub.s32 0, %v922
    %v924 = vrot.slane %v815, %v923
    %v925 = vlaneseq
    %v926 = vshrl.u32 %v925, 7
    %v927 = vsub.s32 0, %v926
    %v928 = vrot.slane %v817, %v927
    %v929 = vlaneseq
    %v930 = vshrl.u32 %v929, 7
    %v931 = vsub.s32 0, %v930
    %v932 = vrot.slane %v819, %v931
    %v933 = vlaneseq
    %v934 = vshrl.u32 %v933, 7
    %v935 = vsub.s32 0, %v934
    %v936 = vrot.slane %v843, %v935
    %v937 = vlaneseq
    %v938 = vshrl.u32 %v937, 7
    %v939 = vsub.s32 0, %v938
    %v940 = vrot.slane %v857, %v939
    %v941 = vlaneseq
    %v942 = vshrl.u32 %v941, 7
    %v943 = vsub.s32 0, %v942
    %v944 = vrot.slane %v865, %v943
    %v945 = vlaneseq
    %v946 = vshrl.u32 %v945, 7
    %v947 = vsub.s32 0, %v946
    %v948 = vrot.slane %v867, %v947
    %v949 = vlaneseq
    %v950 = vshrl.u32 %v949, 7
    %v951 = vsub.s32 0, %v950
    %v952 = vrot.slane %v850, %v951
    %v953 = vlaneseq
    %v954 = vshrl.u32 %v953, 7
    %v955 = vsub.s32 0, %v954
    %v956 = vrot.slane %v864, %v955
    %v957 = vlaneseq
    %v958 = vshrl.u32 %v957, 7
    %v959 = vsub.s32 0, %v958
    %v960 = vrot.slane %v866, %v959
    %v961 = vlaneseq
    %v962 = vshrl.u32 %v961, 7
    %v963 = vsub.s32 0, %v962
    %v964 = vrot.slane %v868, %v963
    %v981 = vmul.f32 %v904, %v869
    %v982 = vmul.f32 %v904, %v870
    %v983 = vmul.f32 %v908, %v871
    %v984 = vmul.f32 %v908, %v872
    %v985 = vmul.f32 %v912, %v873
    %v986 = vmul.f32 %v912, %v874
    %v987 = vmul.f32 %v916, %v875
    %v988 = vmul.f32 %v916, %v876
    %v989 = vmul.f32 %v920, %v877
    %v990 = vmul.f32 %v920, %v878
    %v991 = vmul.f32 %v924, %v879
    %v992 = vmul.f32 %v924, %v880
    %v993 = vmul.f32 %v928, %v881
    %v994 = vmul.f32 %v928, %v882
    %v995 = vmul.f32 %v932, %v883
    %v996 = vmul.f32 %v932, %v884
    %v997 = vmul.f32 %v936, %v885
    %v998 = vmul.f32 %v936, %v886
    %v999 = vmul.f32 %v940, %v887
    %v1000 = vmul.f32 %v940, %v888
    %v1001 = vmul.f32 %v944, %v889
    %v1002 = vmul.f32 %v944, %v890
    %v1003 = vmul.f32 %v948, %v891
    %v1004 = vmul.f32 %v948, %v892
    %v1005 = vmul.f32 %v952, %v893
    %v1006 = vmul.f32 %v952, %v894
    %v1007 = vmul.f32 %v956, %v895
    %v1008 = vmul.f32 %v956, %v896
    %v1009 = vmul.f32 %v960, %v897
    %v1010 = vmul.f32 %v960, %v898
    %v1011 = vmul.f32 %v964, %v899
    %v1012 = vmul.f32 %v964, %v900
    %1013 = vadd.xlane.f32.xlu0 %v981
    %v1014 = vpop.xlane.xlu0 %1013
    %1015 = vadd.xlane.f32.xlu0 %v982
    %v1016 = vpop.xlane.xlu0 %1015
    %1017 = vadd.xlane.f32.xlu0 %v983
    %v1018 = vpop.xlane.xlu0 %1017
    %1019 = vadd.xlane.f32.xlu0 %v984
    %v1020 = vpop.xlane.xlu0 %1019
    %1021 = vadd.xlane.f32.xlu0 %v985
    %v1022 = vpop.xlane.xlu0 %1021
    %1023 = vadd.xlane.f32.xlu0 %v986
    %v1024 = vpop.xlane.xlu0 %1023
    %1025 = vadd.xlane.f32.xlu0 %v987
    %v1026 = vpop.xlane.xlu0 %1025
    %1027 = vadd.xlane.f32.xlu0 %v988
    %v1028 = vpop.xlane.xlu0 %1027
    %1029 = vadd.xlane.f32.xlu0 %v989
    %v1030 = vpop.xlane.xlu0 %1029
    %1031 = vadd.xlane.f32.xlu0 %v990
    %v1032 = vpop.xlane.xlu0 %1031
    %1033 = vadd.xlane.f32.xlu0 %v991
    %v1034 = vpop.xlane.xlu0 %1033
    %1035 = vadd.xlane.f32.xlu0 %v992
    %v1036 = vpop.xlane.xlu0 %1035
    %1037 = vadd.xlane.f32.xlu0 %v993
    %v1038 = vpop.xlane.xlu0 %1037
    %1039 = vadd.xlane.f32.xlu0 %v994
    %v1040 = vpop.xlane.xlu0 %1039
    %1041 = vadd.xlane.f32.xlu0 %v995
    %v1042 = vpop.xlane.xlu0 %1041
    %1043 = vadd.xlane.f32.xlu0 %v996
    %v1044 = vpop.xlane.xlu0 %1043
    %1045 = vadd.xlane.f32.xlu0 %v997
    %v1046 = vpop.xlane.xlu0 %1045
    %1047 = vadd.xlane.f32.xlu0 %v998
    %v1048 = vpop.xlane.xlu0 %1047
    %1049 = vadd.xlane.f32.xlu0 %v999
    %v1050 = vpop.xlane.xlu0 %1049
    %1051 = vadd.xlane.f32.xlu0 %v1000
    %v1052 = vpop.xlane.xlu0 %1051
    %1053 = vadd.xlane.f32.xlu0 %v1001
    %v1054 = vpop.xlane.xlu0 %1053
    %1055 = vadd.xlane.f32.xlu0 %v1002
    %v1056 = vpop.xlane.xlu0 %1055
    %1057 = vadd.xlane.f32.xlu0 %v1003
    %v1058 = vpop.xlane.xlu0 %1057
    %1059 = vadd.xlane.f32.xlu0 %v1004
    %v1060 = vpop.xlane.xlu0 %1059
    %1061 = vadd.xlane.f32.xlu0 %v1005
    %v1062 = vpop.xlane.xlu0 %1061
    %1063 = vadd.xlane.f32.xlu0 %v1006
    %v1064 = vpop.xlane.xlu0 %1063
    %1065 = vadd.xlane.f32.xlu0 %v1007
    %v1066 = vpop.xlane.xlu0 %1065
    %1067 = vadd.xlane.f32.xlu0 %v1008
    %v1068 = vpop.xlane.xlu0 %1067
    %1069 = vadd.xlane.f32.xlu0 %v1009
    %v1070 = vpop.xlane.xlu0 %1069
    %1071 = vadd.xlane.f32.xlu0 %v1010
    %v1072 = vpop.xlane.xlu0 %1071
    %1073 = vadd.xlane.f32.xlu0 %v1011
    %v1074 = vpop.xlane.xlu0 %1073
    %1075 = vadd.xlane.f32.xlu0 %v1012
    %v1076 = vpop.xlane.xlu0 %1075
    %v1077 = vlaneseq
    %v1078 = vand.u32 %v1077, 127
    %s1079 = smul.u32 0, 16
    %v1080 = vstv %s1079
    %v1081 = vadd.s32 %v1078, %v1080
    %vm1082 = vcmp.lt.s32.totalorder %v1081, 8
    %v1115 = vlaneseq
    %v1116 = vshrl.u32 %v1115, 7
    %v1117 = vsub.s32 %v1078, %v1116
    %v1118 = vrot.slane %v1014, %v1117
    %v1119 = vadd.s32 %v1078, 4294967288
    %v1120 = vlaneseq
    %v1121 = vshrl.u32 %v1120, 7
    %v1122 = vsub.s32 %v1119, %v1121
    %v1123 = vrot.slane %v1016, %v1122
    %vm1124 = vcmask 130112
    %v1125 = vsel %vm1124, %v1123, %v1118
    %v1126 = vlaneseq
    %v1127 = vshrl.u32 %v1126, 7
    %v1128 = vsub.s32 %v1078, %v1127
    %v1129 = vrot.slane %v1018, %v1128
    %v1130 = vlaneseq
    %v1131 = vshrl.u32 %v1130, 7
    %v1132 = vsub.s32 %v1119, %v1131
    %v1133 = vrot.slane %v1020, %v1132
    %v1134 = vsel %vm1124, %v1133, %v1129
    %v1135 = vlaneseq
    %v1136 = vshrl.u32 %v1135, 7
    %v1137 = vsub.s32 %v1078, %v1136
    %v1138 = vrot.slane %v1022, %v1137
    %v1139 = vlaneseq
    %v1140 = vshrl.u32 %v1139, 7
    %v1141 = vsub.s32 %v1119, %v1140
    %v1142 = vrot.slane %v1024, %v1141
    %v1143 = vsel %vm1124, %v1142, %v1138
    %v1144 = vlaneseq
    %v1145 = vshrl.u32 %v1144, 7
    %v1146 = vsub.s32 %v1078, %v1145
    %v1147 = vrot.slane %v1026, %v1146
    %v1148 = vlaneseq
    %v1149 = vshrl.u32 %v1148, 7
    %v1150 = vsub.s32 %v1119, %v1149
    %v1151 = vrot.slane %v1028, %v1150
    %v1152 = vsel %vm1124, %v1151, %v1147
    %v1153 = vlaneseq
    %v1154 = vshrl.u32 %v1153, 7
    %v1155 = vsub.s32 %v1078, %v1154
    %v1156 = vrot.slane %v1030, %v1155
    %v1157 = vlaneseq
    %v1158 = vshrl.u32 %v1157, 7
    %v1159 = vsub.s32 %v1119, %v1158
    %v1160 = vrot.slane %v1032, %v1159
    %v1161 = vsel %vm1124, %v1160, %v1156
    %v1162 = vlaneseq
    %v1163 = vshrl.u32 %v1162, 7
    %v1164 = vsub.s32 %v1078, %v1163
    %v1165 = vrot.slane %v1034, %v1164
    %v1166 = vlaneseq
    %v1167 = vshrl.u32 %v1166, 7
    %v1168 = vsub.s32 %v1119, %v1167
    %v1169 = vrot.slane %v1036, %v1168
    %v1170 = vsel %vm1124, %v1169, %v1165
    %v1171 = vlaneseq
    %v1172 = vshrl.u32 %v1171, 7
    %v1173 = vsub.s32 %v1078, %v1172
    %v1174 = vrot.slane %v1038, %v1173
    %v1175 = vlaneseq
    %v1176 = vshrl.u32 %v1175, 7
    %v1177 = vsub.s32 %v1119, %v1176
    %v1178 = vrot.slane %v1040, %v1177
    %v1179 = vsel %vm1124, %v1178, %v1174
    %v1180 = vlaneseq
    %v1181 = vshrl.u32 %v1180, 7
    %v1182 = vsub.s32 %v1078, %v1181
    %v1183 = vrot.slane %v1042, %v1182
    %v1184 = vlaneseq
    %v1185 = vshrl.u32 %v1184, 7
    %v1186 = vsub.s32 %v1119, %v1185
    %v1187 = vrot.slane %v1044, %v1186
    %v1188 = vsel %vm1124, %v1187, %v1183
    %v1189 = vlaneseq
    %v1190 = vshrl.u32 %v1189, 7
    %v1191 = vsub.s32 %v1078, %v1190
    %v1192 = vrot.slane %v1046, %v1191
    %v1193 = vlaneseq
    %v1194 = vshrl.u32 %v1193, 7
    %v1195 = vsub.s32 %v1119, %v1194
    %v1196 = vrot.slane %v1048, %v1195
    %v1197 = vsel %vm1124, %v1196, %v1192
    %v1198 = vlaneseq
    %v1199 = vshrl.u32 %v1198, 7
    %v1200 = vsub.s32 %v1078, %v1199
    %v1201 = vrot.slane %v1050, %v1200
    %v1202 = vlaneseq
    %v1203 = vshrl.u32 %v1202, 7
    %v1204 = vsub.s32 %v1119, %v1203
    %v1205 = vrot.slane %v1052, %v1204
    %v1206 = vsel %vm1124, %v1205, %v1201
    %v1207 = vlaneseq
    %v1208 = vshrl.u32 %v1207, 7
    %v1209 = vsub.s32 %v1078, %v1208
    %v1210 = vrot.slane %v1054, %v1209
    %v1211 = vlaneseq
    %v1212 = vshrl.u32 %v1211, 7
    %v1213 = vsub.s32 %v1119, %v1212
    %v1214 = vrot.slane %v1056, %v1213
    %v1215 = vsel %vm1124, %v1214, %v1210
    %v1216 = vlaneseq
    %v1217 = vshrl.u32 %v1216, 7
    %v1218 = vsub.s32 %v1078, %v1217
    %v1219 = vrot.slane %v1058, %v1218
    %v1220 = vlaneseq
    %v1221 = vshrl.u32 %v1220, 7
    %v1222 = vsub.s32 %v1119, %v1221
    %v1223 = vrot.slane %v1060, %v1222
    %v1224 = vsel %vm1124, %v1223, %v1219
    %v1225 = vlaneseq
    %v1226 = vshrl.u32 %v1225, 7
    %v1227 = vsub.s32 %v1078, %v1226
    %v1228 = vrot.slane %v1062, %v1227
    %v1229 = vlaneseq
    %v1230 = vshrl.u32 %v1229, 7
    %v1231 = vsub.s32 %v1119, %v1230
    %v1232 = vrot.slane %v1064, %v1231
    %v1233 = vsel %vm1124, %v1232, %v1228
    %v1234 = vlaneseq
    %v1235 = vshrl.u32 %v1234, 7
    %v1236 = vsub.s32 %v1078, %v1235
    %v1237 = vrot.slane %v1066, %v1236
    %v1238 = vlaneseq
    %v1239 = vshrl.u32 %v1238, 7
    %v1240 = vsub.s32 %v1119, %v1239
    %v1241 = vrot.slane %v1068, %v1240
    %v1242 = vsel %vm1124, %v1241, %v1237
    %v1243 = vlaneseq
    %v1244 = vshrl.u32 %v1243, 7
    %v1245 = vsub.s32 %v1078, %v1244
    %v1246 = vrot.slane %v1070, %v1245
    %v1247 = vlaneseq
    %v1248 = vshrl.u32 %v1247, 7
    %v1249 = vsub.s32 %v1119, %v1248
    %v1250 = vrot.slane %v1072, %v1249
    %v1251 = vsel %vm1124, %v1250, %v1246
    %v1252 = vlaneseq
    %v1253 = vshrl.u32 %v1252, 7
    %v1254 = vsub.s32 %v1078, %v1253
    %v1255 = vrot.slane %v1074, %v1254
    %v1256 = vlaneseq
    %v1257 = vshrl.u32 %v1256, 7
    %v1258 = vsub.s32 %v1119, %v1257
    %v1259 = vrot.slane %v1076, %v1258
    %v1260 = vsel %vm1124, %v1259, %v1255
    %vm1261 = vcmask 1041409
    %v1262 = vsel %vm1261, %v1134, %v1125
    %vm1263 = vcmask 1042434
    %v1264 = vsel %vm1263, %v1143, %v1262
    %vm1265 = vcmask 1043459
    %v1266 = vsel %vm1265, %v1152, %v1264
    %vm1267 = vcmask 1044484
    %v1268 = vsel %vm1267, %v1161, %v1266
    %vm1269 = vcmask 1045509
    %v1270 = vsel %vm1269, %v1170, %v1268
    %vm1271 = vcmask 1046534
    %v1272 = vsel %vm1271, %v1179, %v1270
    %vm1273 = vcmask 1047559
    %v1274 = vsel %vm1273, %v1188, %v1272
    %v1275 = vsel %vm1261, %v1206, %v1197
    %v1276 = vsel %vm1263, %v1215, %v1275
    %v1277 = vsel %vm1265, %v1224, %v1276
    %v1278 = vsel %vm1267, %v1233, %v1277
    %v1279 = vsel %vm1269, %v1242, %v1278
    %v1280 = vsel %vm1271, %v1251, %v1279
    %v1281 = vsel %vm1273, %v1260, %v1280
    %v1284 = vsel %vm1082, %v1274, -1e+30
    %v1285 = vsel %vm1082, %v1281, -1e+30
    %v1286 = vld [vmem:[#allocation3] sm:$0xff]
    %v1287 = vld [vmem:[#allocation3 + $0x8] sm:$0xff]
    %vm1288 = vcmask 130048
    %v1289 = vsel %vm1288, %v1284, -inf
    %1290 = vmax.xlane.f32.xlu0 %v1289
    %v1291 = vpop.xlane.xlu0 %1290
    %v1292 = vsel %vm1288, %v1285, -inf
    %1293 = vmax.xlane.f32.xlu0 %v1292
    %v1294 = vpop.xlane.xlu0 %1293
    %v1295 = vmax.f32 %v1286, %v1291
    %v1296 = vmax.f32 %v1287, %v1294
    %v1297 = vsub.f32 %v1286, %v1295
    %v1298 = vsub.f32 %v1287, %v1296
    %v1299 = vmul.f32 %v1297, 1.442695
    %v1300 = vpow.pop %v1299
    %v1301 = vmul.f32 %v1298, 1.442695
    %v1302 = vpow.pop %v1301
    %1304 = vset.pattern.permute.xlu0 0
    %1305 = vperm.xlu0 %1304, %v1295
    %v1306 = vpop.permute.xlu0 %1305
    %1309 = vset.pattern.permute.xlu0 0
    %1310 = vperm.xlu0 %1309, %v1296
    %v1311 = vpop.permute.xlu0 %1310
    %v1313 = vsub.f32 %v1284, %v1306
    %v1314 = vsub.f32 %v1285, %v1311
    %v1315 = vmul.f32 %v1313, 1.442695
    %v1316 = vpow.pop %v1315
    %v1317 = vmul.f32 %v1314, 1.442695
    %v1318 = vpow.pop %v1317
    %v1319 = vld [vmem:[#allocation4] sm:$0xff]
    %v1320 = vld [vmem:[#allocation4 + $0x8] sm:$0xff]
    %v1321 = vmul.f32 %v1300, %v1319
    %v1322 = vmul.f32 %v1302, %v1320
    %v1323 = vsel %vm1288, %v1316, 0.0
    %1324 = vadd.xlane.f32.xlu0 %v1323
    %v1325 = vpop.xlane.xlu0 %1324
    %v1326 = vsel %vm1288, %v1318, 0.0
    %1327 = vadd.xlane.f32.xlu0 %v1326
    %v1328 = vpop.xlane.xlu0 %1327
    %v1329 = vadd.f32 %v1321, %v1325
    %v1330 = vadd.f32 %v1322, %v1328
    %vm1331 = vcmask 7168
    %1332 = vst.msk [vmem:[#allocation4] sm:$0xff] %vm1331, %v1329
    %1333 = vst.msk [vmem:[#allocation4 + $0x8] sm:$0xff] %vm1331, %v1330
    %v1334 = vld [vmem:[#allocation5] sm:$0xff]
    %v1335 = vld [vmem:[#allocation5 + $0x8] sm:$0xff]
    %1337 = vset.pattern.permute.xlu0 0
    %1338 = vperm.xlu0 %1337, %v1300
    %v1339 = vpop.permute.xlu0 %1338
    %1342 = vset.pattern.permute.xlu0 0
    %1343 = vperm.xlu0 %1342, %v1302
    %v1344 = vpop.permute.xlu0 %1343
    %v1346 = vmul.f32 %v1339, %v1334
    %v1347 = vmul.f32 %v1344, %v1335
    %v1348 = vpack.c.bf16 %v1318, %v1316
    %v1350 = vcombine.high %v1348, %v1348
    %v1352 = vunpack.c.l.s4 1966171168
    %v1353 = vunpack.c.0.s8 %v1352
    %v1354 = vlaneseq
    %v1355 = vshrl.u32 %v1354, 7
    %v1356 = vsub.s32 %v1353, %v1355
    %v1357 = vrot.slane %v1348, %v1356
    %v1359 = vunpack.c.l.s4 1966171168
    %v1360 = vunpack.c.0.s8 %v1359
    %v1361 = vlaneseq
    %v1362 = vshrl.u32 %v1361, 7
    %v1363 = vsub.s32 %v1360, %v1362
    %v1364 = vrot.slane %v1350, %v1363
    %v1365 = vcombine.high %v1357, %v1357
    %v1366 = vcombine.high %v1364, %v1364
    %v1368 = vunpack.c.l.s4 1966171168
    %v1369 = vunpack.c.0.s8 %v1368
    %v1370 = vlaneseq
    %v1371 = vshrl.u32 %v1370, 7
    %v1372 = vsub.s32 %v1369, %v1371
    %v1373 = vrot.slane %v1357, %v1372
    %v1375 = vunpack.c.l.s4 1966171168
    %v1376 = vunpack.c.0.s8 %v1375
    %v1377 = vlaneseq
    %v1378 = vshrl.u32 %v1377, 7
    %v1379 = vsub.s32 %v1376, %v1378
    %v1380 = vrot.slane %v1364, %v1379
    %v1382 = vunpack.c.l.s4 1966171168
    %v1383 = vunpack.c.0.s8 %v1382
    %v1384 = vlaneseq
    %v1385 = vshrl.u32 %v1384, 7
    %v1386 = vsub.s32 %v1383, %v1385
    %v1387 = vrot.slane %v1365, %v1386
    %v1389 = vunpack.c.l.s4 1966171168
    %v1390 = vunpack.c.0.s8 %v1389
    %v1391 = vlaneseq
    %v1392 = vshrl.u32 %v1391, 7
    %v1393 = vsub.s32 %v1390, %v1392
    %v1394 = vrot.slane %v1366, %v1393
    %v1395 = vcombine.high %v1373, %v1373
    %v1396 = vcombine.high %v1380, %v1380
    %v1397 = vcombine.high %v1387, %v1387
    %v1398 = vcombine.high %v1394, %v1394
    %v1399 = vunpack.i.l.s16 %v1373
    %v1400 = vunpack.i.h.s16 %v1373
    %v1401 = vunpack.i.l.s16 %v1387
    %v1402 = vunpack.i.h.s16 %v1387
    %v1403 = vunpack.i.l.s16 %v1395
    %v1404 = vunpack.i.h.s16 %v1395
    %v1405 = vunpack.i.l.s16 %v1397
    %v1406 = vunpack.i.h.s16 %v1397
    %v1407 = vunpack.i.l.s16 %v1380
    %v1408 = vunpack.i.h.s16 %v1380
    %v1409 = vunpack.i.l.s16 %v1394
    %v1410 = vunpack.i.h.s16 %v1394
    %v1411 = vunpack.i.l.s16 %v1396
    %v1412 = vunpack.i.h.s16 %v1396
    %v1413 = vunpack.i.l.s16 %v1398
    %v1414 = vunpack.i.h.s16 %v1398
    %v1415 = vpack.i.b16 %v1399, %v1399
    %v1416 = vlaneseq
    %v1417 = vshrl.u32 %v1416, 7
    %v1418 = vsub.s32 0, %v1417
    %v1419 = vrot.slane %v1415, %v1418
    %v1422 = vunpack.c.l.b16 %v733
    %v1423 = vunpack.c.l.b16 %v734
    %v1424 = vpack.c.b16 %v1423, %v1422
    %v1427 = vsel %vm1288, %v1419, 0
    %1429 = vmatprep.subr.bf16.mxu0 0
    %1430 = vmatpush1.bf16.msra.mxu0 0
    %1431 = vmatprep.subr.bf16.mxu0 0
    %1432 = vmatpush1.bf16.msra.mxu0 0
    %1433 = vmatprep.subr.bf16.mxu0 0
    %1434 = vmatpush1.bf16.msra.mxu0 0
    %1435 = vmatprep.subr.bf16.mxu0 0
    %1436 = vmatpush1.bf16.msra.mxu0 0
    %1437 = vmatprep.subr.bf16.mxu0 0
    %1438 = vmatpush1.bf16.msra.mxu0 0
    %1439 = vmatprep.subr.bf16.mxu0 0
    %1440 = vmatpush1.bf16.msra.mxu0 0
    %1441 = vmatprep.subr.bf16.mxu0 0
    %1442 = vmatpush1.bf16.msra.mxu0 0
    %1443 = vmatprep.subr.bf16.mxu0 0
    %1444 = vmatpush1.bf16.msra.mxu0 %v1424
    %1445 = vmatprep.subr.bf16.mxu0 0
    %1446 = vmatpush2.bf16.msra.mxu0 0
    %1447 = vmatprep.subr.bf16.mxu0 0
    %1448 = vmatpush2.bf16.msra.mxu0 0
    %1449 = vmatprep.subr.bf16.mxu0 0
    %1450 = vmatpush2.bf16.msra.mxu0 0
    %1451 = vmatprep.subr.bf16.mxu0 0
    %1452 = vmatpush2.bf16.msra.mxu0 0
    %1453 = vmatprep.subr.bf16.mxu0 0
    %1454 = vmatpush2.bf16.msra.mxu0 0
    %1455 = vmatprep.subr.bf16.mxu0 0
    %1456 = vmatpush2.bf16.msra.mxu0 0
    %1457 = vmatprep.subr.bf16.mxu0 0
    %1458 = vmatpush2.bf16.msra.mxu0 0
    %1459 = vmatprep.subr.bf16.mxu0 0
    %1460 = vmatpush2.bf16.msra.mxu0 0
    %1461 = vmatprep.mubr.bf16.mxu0 0
    %1462 = vmatmul.mubr.bf16.gmra.mxu0 %v1427
    %v1463 = vpop.f32.mrf.mxu0
    %v1464 = vadd.f32 0.0, %v1463
    %v1465 = vpop.f32.mrf.mxu0
    %v1466 = vpop.f32.mrf.mxu0
    %v1467 = vpop.f32.mrf.mxu0
    %1468 = vdwg.mxu0
    %v1469 = vpack.i.b16 %v1400, %v1400
    %v1470 = vlaneseq
    %v1471 = vshrl.u32 %v1470, 7
    %v1472 = vsub.s32 0, %v1471
    %v1473 = vrot.slane %v1469, %v1472
    %v1476 = vunpack.c.l.b16 %v735
    %v1477 = vunpack.c.l.b16 %v736
    %v1478 = vpack.c.b16 %v1477, %v1476
    %v1481 = vsel %vm1288, %v1473, 0
    %1483 = vmatprep.subr.bf16.mxu0 0
    %1484 = vmatpush1.bf16.msra.mxu0 0
    %1485 = vmatprep.subr.bf16.mxu0 0
    %1486 = vmatpush1.bf16.msra.mxu0 0
    %1487 = vmatprep.subr.bf16.mxu0 0
    %1488 = vmatpush1.bf16.msra.mxu0 0
    %1489 = vmatprep.subr.bf16.mxu0 0
    %1490 = vmatpush1.bf16.msra.mxu0 0
    %1491 = vmatprep.subr.bf16.mxu0 0
    %1492 = vmatpush1.bf16.msra.mxu0 0
    %1493 = vmatprep.subr.bf16.mxu0 0
    %1494 = vmatpush1.bf16.msra.mxu0 0
    %1495 = vmatprep.subr.bf16.mxu0 0
    %1496 = vmatpush1.bf16.msra.mxu0 0
    %1497 = vmatprep.subr.bf16.mxu0 0
    %1498 = vmatpush1.bf16.msra.mxu0 %v1478
    %1499 = vmatprep.subr.bf16.mxu0 0
    %1500 = vmatpush2.bf16.msra.mxu0 0
    %1501 = vmatprep.subr.bf16.mxu0 0
    %1502 = vmatpush2.bf16.msra.mxu0 0
    %1503 = vmatprep.subr.bf16.mxu0 0
    %1504 = vmatpush2.bf16.msra.mxu0 0
    %1505 = vmatprep.subr.bf16.mxu0 0
    %1506 = vmatpush2.bf16.msra.mxu0 0
    %1507 = vmatprep.subr.bf16.mxu0 0
    %1508 = vmatpush2.bf16.msra.mxu0 0
    %1509 = vmatprep.subr.bf16.mxu0 0
    %1510 = vmatpush2.bf16.msra.mxu0 0
    %1511 = vmatprep.subr.bf16.mxu0 0
    %1512 = vmatpush2.bf16.msra.mxu0 0
    %1513 = vmatprep.subr.bf16.mxu0 0
    %1514 = vmatpush2.bf16.msra.mxu0 0
    %1515 = vmatprep.mubr.bf16.mxu0 0
    %1516 = vmatmul.mubr.bf16.gmra.mxu0 %v1481
    %v1517 = vpop.f32.mrf.mxu0
    %v1518 = vadd.f32 0.0, %v1517
    %v1519 = vpop.f32.mrf.mxu0
    %v1520 = vpop.f32.mrf.mxu0
    %v1521 = vpop.f32.mrf.mxu0
    %1522 = vdwg.mxu0
    %v1523 = vpack.i.b16 %v1401, %v1401
    %v1524 = vlaneseq
    %v1525 = vshrl.u32 %v1524, 7
    %v1526 = vsub.s32 0, %v1525
    %v1527 = vrot.slane %v1523, %v1526
    %v1530 = vunpack.c.l.b16 %v737
    %v1531 = vunpack.c.l.b16 %v738
    %v1532 = vpack.c.b16 %v1531, %v1530
    %v1535 = vsel %vm1288, %v1527, 0
    %1537 = vmatprep.subr.bf16.mxu0 0
    %1538 = vmatpush1.bf16.msra.mxu0 0
    %1539 = vmatprep.subr.bf16.mxu0 0
    %1540 = vmatpush1.bf16.msra.mxu0 0
    %1541 = vmatprep.subr.bf16.mxu0 0
    %1542 = vmatpush1.bf16.msra.mxu0 0
    %1543 = vmatprep.subr.bf16.mxu0 0
    %1544 = vmatpush1.bf16.msra.mxu0 0
    %1545 = vmatprep.subr.bf16.mxu0 0
    %1546 = vmatpush1.bf16.msra.mxu0 0
    %1547 = vmatprep.subr.bf16.mxu0 0
    %1548 = vmatpush1.bf16.msra.mxu0 0
    %1549 = vmatprep.subr.bf16.mxu0 0
    %1550 = vmatpush1.bf16.msra.mxu0 0
    %1551 = vmatprep.subr.bf16.mxu0 0
    %1552 = vmatpush1.bf16.msra.mxu0 %v1532
    %1553 = vmatprep.subr.bf16.mxu0 0
    %1554 = vmatpush2.bf16.msra.mxu0 0
    %1555 = vmatprep.subr.bf16.mxu0 0
    %1556 = vmatpush2.bf16.msra.mxu0 0
    %1557 = vmatprep.subr.bf16.mxu0 0
    %1558 = vmatpush2.bf16.msra.mxu0 0
    %1559 = vmatprep.subr.bf16.mxu0 0
    %1560 = vmatpush2.bf16.msra.mxu0 0
    %1561 = vmatprep.subr.bf16.mxu0 0
    %1562 = vmatpush2.bf16.msra.mxu0 0
    %1563 = vmatprep.subr.bf16.mxu0 0
    %1564 = vmatpush2.bf16.msra.mxu0 0
    %1565 = vmatprep.subr.bf16.mxu0 0
    %1566 = vmatpush2.bf16.msra.mxu0 0
    %1567 = vmatprep.subr.bf16.mxu0 0
    %1568 = vmatpush2.bf16.msra.mxu0 0
    %1569 = vmatprep.mubr.bf16.mxu0 0
    %1570 = vmatmul.mubr.bf16.gmra.mxu0 %v1535
    %v1571 = vpop.f32.mrf.mxu0
    %v1572 = vadd.f32 0.0, %v1571
    %v1573 = vpop.f32.mrf.mxu0
    %v1574 = vpop.f32.mrf.mxu0
    %v1575 = vpop.f32.mrf.mxu0
    %1576 = vdwg.mxu0
    %v1577 = vpack.i.b16 %v1402, %v1402
    %v1578 = vlaneseq
    %v1579 = vshrl.u32 %v1578, 7
    %v1580 = vsub.s32 0, %v1579
    %v1581 = vrot.slane %v1577, %v1580
    %v1584 = vunpack.c.l.b16 %v739
    %v1585 = vunpack.c.l.b16 %v740
    %v1586 = vpack.c.b16 %v1585, %v1584
    %v1589 = vsel %vm1288, %v1581, 0
    %1591 = vmatprep.subr.bf16.mxu0 0
    %1592 = vmatpush1.bf16.msra.mxu0 0
    %1593 = vmatprep.subr.bf16.mxu0 0
    %1594 = vmatpush1.bf16.msra.mxu0 0
    %1595 = vmatprep.subr.bf16.mxu0 0
    %1596 = vmatpush1.bf16.msra.mxu0 0
    %1597 = vmatprep.subr.bf16.mxu0 0
    %1598 = vmatpush1.bf16.msra.mxu0 0
    %1599 = vmatprep.subr.bf16.mxu0 0
    %1600 = vmatpush1.bf16.msra.mxu0 0
    %1601 = vmatprep.subr.bf16.mxu0 0
    %1602 = vmatpush1.bf16.msra.mxu0 0
    %1603 = vmatprep.subr.bf16.mxu0 0
    %1604 = vmatpush1.bf16.msra.mxu0 0
    %1605 = vmatprep.subr.bf16.mxu0 0
    %1606 = vmatpush1.bf16.msra.mxu0 %v1586
    %1607 = vmatprep.subr.bf16.mxu0 0
    %1608 = vmatpush2.bf16.msra.mxu0 0
    %1609 = vmatprep.subr.bf16.mxu0 0
    %1610 = vmatpush2.bf16.msra.mxu0 0
    %1611 = vmatprep.subr.bf16.mxu0 0
    %1612 = vmatpush2.bf16.msra.mxu0 0
    %1613 = vmatprep.subr.bf16.mxu0 0
    %1614 = vmatpush2.bf16.msra.mxu0 0
    %1615 = vmatprep.subr.bf16.mxu0 0
    %1616 = vmatpush2.bf16.msra.mxu0 0
    %1617 = vmatprep.subr.bf16.mxu0 0
    %1618 = vmatpush2.bf16.msra.mxu0 0
    %1619 = vmatprep.subr.bf16.mxu0 0
    %1620 = vmatpush2.bf16.msra.mxu0 0
    %1621 = vmatprep.subr.bf16.mxu0 0
    %1622 = vmatpush2.bf16.msra.mxu0 0
    %1623 = vmatprep.mubr.bf16.mxu0 0
    %1624 = vmatmul.mubr.bf16.gmra.mxu0 %v1589
    %v1625 = vpop.f32.mrf.mxu0
    %v1626 = vadd.f32 0.0, %v1625
    %v1627 = vpop.f32.mrf.mxu0
    %v1628 = vpop.f32.mrf.mxu0
    %v1629 = vpop.f32.mrf.mxu0
    %1630 = vdwg.mxu0
    %v1631 = vpack.i.b16 %v1403, %v1403
    %v1632 = vlaneseq
    %v1633 = vshrl.u32 %v1632, 7
    %v1634 = vsub.s32 0, %v1633
    %v1635 = vrot.slane %v1631, %v1634
    %v1638 = vunpack.c.l.b16 %v741
    %v1639 = vunpack.c.l.b16 %v742
    %v1640 = vpack.c.b16 %v1639, %v1638
    %v1643 = vsel %vm1288, %v1635, 0
    %1645 = vmatprep.subr.bf16.mxu0 0
    %1646 = vmatpush1.bf16.msra.mxu0 0
    %1647 = vmatprep.subr.bf16.mxu0 0
    %1648 = vmatpush1.bf16.msra.mxu0 0
    %1649 = vmatprep.subr.bf16.mxu0 0
    %1650 = vmatpush1.bf16.msra.mxu0 0
    %1651 = vmatprep.subr.bf16.mxu0 0
    %1652 = vmatpush1.bf16.msra.mxu0 0
    %1653 = vmatprep.subr.bf16.mxu0 0
    %1654 = vmatpush1.bf16.msra.mxu0 0
    %1655 = vmatprep.subr.bf16.mxu0 0
    %1656 = vmatpush1.bf16.msra.mxu0 0
    %1657 = vmatprep.subr.bf16.mxu0 0
    %1658 = vmatpush1.bf16.msra.mxu0 0
    %1659 = vmatprep.subr.bf16.mxu0 0
    %1660 = vmatpush1.bf16.msra.mxu0 %v1640
    %1661 = vmatprep.subr.bf16.mxu0 0
    %1662 = vmatpush2.bf16.msra.mxu0 0
    %1663 = vmatprep.subr.bf16.mxu0 0
    %1664 = vmatpush2.bf16.msra.mxu0 0
    %1665 = vmatprep.subr.bf16.mxu0 0
    %1666 = vmatpush2.bf16.msra.mxu0 0
    %1667 = vmatprep.subr.bf16.mxu0 0
    %1668 = vmatpush2.bf16.msra.mxu0 0
    %1669 = vmatprep.subr.bf16.mxu0 0
    %1670 = vmatpush2.bf16.msra.mxu0 0
    %1671 = vmatprep.subr.bf16.mxu0 0
    %1672 = vmatpush2.bf16.msra.mxu0 0
    %1673 = vmatprep.subr.bf16.mxu0 0
    %1674 = vmatpush2.bf16.msra.mxu0 0
    %1675 = vmatprep.subr.bf16.mxu0 0
    %1676 = vmatpush2.bf16.msra.mxu0 0
    %1677 = vmatprep.mubr.bf16.mxu0 0
    %1678 = vmatmul.mubr.bf16.gmra.mxu0 %v1643
    %v1679 = vpop.f32.mrf.mxu0
    %v1680 = vadd.f32 0.0, %v1679
    %v1681 = vpop.f32.mrf.mxu0
    %v1682 = vpop.f32.mrf.mxu0
    %v1683 = vpop.f32.mrf.mxu0
    %1684 = vdwg.mxu0
    %v1685 = vpack.i.b16 %v1404, %v1404
    %v1686 = vlaneseq
    %v1687 = vshrl.u32 %v1686, 7
    %v1688 = vsub.s32 0, %v1687
    %v1689 = vrot.slane %v1685, %v1688
    %v1692 = vunpack.c.l.b16 %v743
    %v1693 = vunpack.c.l.b16 %v744
    %v1694 = vpack.c.b16 %v1693, %v1692
    %v1697 = vsel %vm1288, %v1689, 0
    %1699 = vmatprep.subr.bf16.mxu0 0
    %1700 = vmatpush1.bf16.msra.mxu0 0
    %1701 = vmatprep.subr.bf16.mxu0 0
    %1702 = vmatpush1.bf16.msra.mxu0 0
    %1703 = vmatprep.subr.bf16.mxu0 0
    %1704 = vmatpush1.bf16.msra.mxu0 0
    %1705 = vmatprep.subr.bf16.mxu0 0
    %1706 = vmatpush1.bf16.msra.mxu0 0
    %1707 = vmatprep.subr.bf16.mxu0 0
    %1708 = vmatpush1.bf16.msra.mxu0 0
    %1709 = vmatprep.subr.bf16.mxu0 0
    %1710 = vmatpush1.bf16.msra.mxu0 0
    %1711 = vmatprep.subr.bf16.mxu0 0
    %1712 = vmatpush1.bf16.msra.mxu0 0
    %1713 = vmatprep.subr.bf16.mxu0 0
    %1714 = vmatpush1.bf16.msra.mxu0 %v1694
    %1715 = vmatprep.subr.bf16.mxu0 0
    %1716 = vmatpush2.bf16.msra.mxu0 0
    %1717 = vmatprep.subr.bf16.mxu0 0
    %1718 = vmatpush2.bf16.msra.mxu0 0
    %1719 = vmatprep.subr.bf16.mxu0 0
    %1720 = vmatpush2.bf16.msra.mxu0 0
    %1721 = vmatprep.subr.bf16.mxu0 0
    %1722 = vmatpush2.bf16.msra.mxu0 0
    %1723 = vmatprep.subr.bf16.mxu0 0
    %1724 = vmatpush2.bf16.msra.mxu0 0
    %1725 = vmatprep.subr.bf16.mxu0 0
    %1726 = vmatpush2.bf16.msra.mxu0 0
    %1727 = vmatprep.subr.bf16.mxu0 0
    %1728 = vmatpush2.bf16.msra.mxu0 0
    %1729 = vmatprep.subr.bf16.mxu0 0
    %1730 = vmatpush2.bf16.msra.mxu0 0
    %1731 = vmatprep.mubr.bf16.mxu0 0
    %1732 = vmatmul.mubr.bf16.gmra.mxu0 %v1697
    %v1733 = vpop.f32.mrf.mxu0
    %v1734 = vadd.f32 0.0, %v1733
    %v1735 = vpop.f32.mrf.mxu0
    %v1736 = vpop.f32.mrf.mxu0
    %v1737 = vpop.f32.mrf.mxu0
    %1738 = vdwg.mxu0
    %v1739 = vpack.i.b16 %v1405, %v1405
    %v1740 = vlaneseq
    %v1741 = vshrl.u32 %v1740, 7
    %v1742 = vsub.s32 0, %v1741
    %v1743 = vrot.slane %v1739, %v1742
    %v1746 = vunpack.c.l.b16 %v745
    %v1747 = vunpack.c.l.b16 %v746
    %v1748 = vpack.c.b16 %v1747, %v1746
    %v1751 = vsel %vm1288, %v1743, 0
    %1753 = vmatprep.subr.bf16.mxu0 0
    %1754 = vmatpush1.bf16.msra.mxu0 0
    %1755 = vmatprep.subr.bf16.mxu0 0
    %1756 = vmatpush1.bf16.msra.mxu0 0
    %1757 = vmatprep.subr.bf16.mxu0 0
    %1758 = vmatpush1.bf16.msra.mxu0 0
    %1759 = vmatprep.subr.bf16.mxu0 0
    %1760 = vmatpush1.bf16.msra.mxu0 0
    %1761 = vmatprep.subr.bf16.mxu0 0
    %1762 = vmatpush1.bf16.msra.mxu0 0
    %1763 = vmatprep.subr.bf16.mxu0 0
    %1764 = vmatpush1.bf16.msra.mxu0 0
    %1765 = vmatprep.subr.bf16.mxu0 0
    %1766 = vmatpush1.bf16.msra.mxu0 0
    %1767 = vmatprep.subr.bf16.mxu0 0
    %1768 = vmatpush1.bf16.msra.mxu0 %v1748
    %1769 = vmatprep.subr.bf16.mxu0 0
    %1770 = vmatpush2.bf16.msra.mxu0 0
    %1771 = vmatprep.subr.bf16.mxu0 0
    %1772 = vmatpush2.bf16.msra.mxu0 0
    %1773 = vmatprep.subr.bf16.mxu0 0
    %1774 = vmatpush2.bf16.msra.mxu0 0
    %1775 = vmatprep.subr.bf16.mxu0 0
    %1776 = vmatpush2.bf16.msra.mxu0 0
    %1777 = vmatprep.subr.bf16.mxu0 0
    %1778 = vmatpush2.bf16.msra.mxu0 0
    %1779 = vmatprep.subr.bf16.mxu0 0
    %1780 = vmatpush2.bf16.msra.mxu0 0
    %1781 = vmatprep.subr.bf16.mxu0 0
    %1782 = vmatpush2.bf16.msra.mxu0 0
    %1783 = vmatprep.subr.bf16.mxu0 0
    %1784 = vmatpush2.bf16.msra.mxu0 0
    %1785 = vmatprep.mubr.bf16.mxu0 0
    %1786 = vmatmul.mubr.bf16.gmra.mxu0 %v1751
    %v1787 = vpop.f32.mrf.mxu0
    %v1788 = vadd.f32 0.0, %v1787
    %v1789 = vpop.f32.mrf.mxu0
    %v1790 = vpop.f32.mrf.mxu0
    %v1791 = vpop.f32.mrf.mxu0
    %1792 = vdwg.mxu0
    %v1793 = vpack.i.b16 %v1406, %v1406
    %v1794 = vlaneseq
    %v1795 = vshrl.u32 %v1794, 7
    %v1796 = vsub.s32 0, %v1795
    %v1797 = vrot.slane %v1793, %v1796
    %v1800 = vunpack.c.l.b16 %v747
    %v1801 = vunpack.c.l.b16 %v748
    %v1802 = vpack.c.b16 %v1801, %v1800
    %v1805 = vsel %vm1288, %v1797, 0
    %1807 = vmatprep.subr.bf16.mxu0 0
    %1808 = vmatpush1.bf16.msra.mxu0 0
    %1809 = vmatprep.subr.bf16.mxu0 0
    %1810 = vmatpush1.bf16.msra.mxu0 0
    %1811 = vmatprep.subr.bf16.mxu0 0
    %1812 = vmatpush1.bf16.msra.mxu0 0
    %1813 = vmatprep.subr.bf16.mxu0 0
    %1814 = vmatpush1.bf16.msra.mxu0 0
    %1815 = vmatprep.subr.bf16.mxu0 0
    %1816 = vmatpush1.bf16.msra.mxu0 0
    %1817 = vmatprep.subr.bf16.mxu0 0
    %1818 = vmatpush1.bf16.msra.mxu0 0
    %1819 = vmatprep.subr.bf16.mxu0 0
    %1820 = vmatpush1.bf16.msra.mxu0 0
    %1821 = vmatprep.subr.bf16.mxu0 0
    %1822 = vmatpush1.bf16.msra.mxu0 %v1802
    %1823 = vmatprep.subr.bf16.mxu0 0
    %1824 = vmatpush2.bf16.msra.mxu0 0
    %1825 = vmatprep.subr.bf16.mxu0 0
    %1826 = vmatpush2.bf16.msra.mxu0 0
    %1827 = vmatprep.subr.bf16.mxu0 0
    %1828 = vmatpush2.bf16.msra.mxu0 0
    %1829 = vmatprep.subr.bf16.mxu0 0
    %1830 = vmatpush2.bf16.msra.mxu0 0
    %1831 = vmatprep.subr.bf16.mxu0 0
    %1832 = vmatpush2.bf16.msra.mxu0 0
    %1833 = vmatprep.subr.bf16.mxu0 0
    %1834 = vmatpush2.bf16.msra.mxu0 0
    %1835 = vmatprep.subr.bf16.mxu0 0
    %1836 = vmatpush2.bf16.msra.mxu0 0
    %1837 = vmatprep.subr.bf16.mxu0 0
    %1838 = vmatpush2.bf16.msra.mxu0 0
    %1839 = vmatprep.mubr.bf16.mxu0 0
    %1840 = vmatmul.mubr.bf16.gmra.mxu0 %v1805
    %v1841 = vpop.f32.mrf.mxu0
    %v1842 = vadd.f32 0.0, %v1841
    %v1843 = vpop.f32.mrf.mxu0
    %v1844 = vpop.f32.mrf.mxu0
    %v1845 = vpop.f32.mrf.mxu0
    %1846 = vdwg.mxu0
    %v1847 = vpack.i.b16 %v1407, %v1407
    %v1848 = vlaneseq
    %v1849 = vshrl.u32 %v1848, 7
    %v1850 = vsub.s32 0, %v1849
    %v1851 = vrot.slane %v1847, %v1850
    %v1854 = vunpack.c.l.b16 %v749
    %v1855 = vunpack.c.l.b16 %v750
    %v1856 = vpack.c.b16 %v1855, %v1854
    %v1859 = vsel %vm1288, %v1851, 0
    %1861 = vmatprep.subr.bf16.mxu0 0
    %1862 = vmatpush1.bf16.msra.mxu0 0
    %1863 = vmatprep.subr.bf16.mxu0 0
    %1864 = vmatpush1.bf16.msra.mxu0 0
    %1865 = vmatprep.subr.bf16.mxu0 0
    %1866 = vmatpush1.bf16.msra.mxu0 0
    %1867 = vmatprep.subr.bf16.mxu0 0
    %1868 = vmatpush1.bf16.msra.mxu0 0
    %1869 = vmatprep.subr.bf16.mxu0 0
    %1870 = vmatpush1.bf16.msra.mxu0 0
    %1871 = vmatprep.subr.bf16.mxu0 0
    %1872 = vmatpush1.bf16.msra.mxu0 0
    %1873 = vmatprep.subr.bf16.mxu0 0
    %1874 = vmatpush1.bf16.msra.mxu0 0
    %1875 = vmatprep.subr.bf16.mxu0 0
    %1876 = vmatpush1.bf16.msra.mxu0 %v1856
    %1877 = vmatprep.subr.bf16.mxu0 0
    %1878 = vmatpush2.bf16.msra.mxu0 0
    %1879 = vmatprep.subr.bf16.mxu0 0
    %1880 = vmatpush2.bf16.msra.mxu0 0
    %1881 = vmatprep.subr.bf16.mxu0 0
    %1882 = vmatpush2.bf16.msra.mxu0 0
    %1883 = vmatprep.subr.bf16.mxu0 0
    %1884 = vmatpush2.bf16.msra.mxu0 0
    %1885 = vmatprep.subr.bf16.mxu0 0
    %1886 = vmatpush2.bf16.msra.mxu0 0
    %1887 = vmatprep.subr.bf16.mxu0 0
    %1888 = vmatpush2.bf16.msra.mxu0 0
    %1889 = vmatprep.subr.bf16.mxu0 0
    %1890 = vmatpush2.bf16.msra.mxu0 0
    %1891 = vmatprep.subr.bf16.mxu0 0
    %1892 = vmatpush2.bf16.msra.mxu0 0
    %1893 = vmatprep.mubr.bf16.mxu0 0
    %1894 = vmatmul.mubr.bf16.gmra.mxu0 %v1859
    %v1895 = vpop.f32.mrf.mxu0
    %v1896 = vadd.f32 0.0, %v1895
    %v1897 = vpop.f32.mrf.mxu0
    %v1898 = vpop.f32.mrf.mxu0
    %v1899 = vpop.f32.mrf.mxu0
    %1900 = vdwg.mxu0
    %v1901 = vpack.i.b16 %v1408, %v1408
    %v1902 = vlaneseq
    %v1903 = vshrl.u32 %v1902, 7
    %v1904 = vsub.s32 0, %v1903
    %v1905 = vrot.slane %v1901, %v1904
    %v1908 = vunpack.c.l.b16 %v751
    %v1909 = vunpack.c.l.b16 %v752
    %v1910 = vpack.c.b16 %v1909, %v1908
    %v1913 = vsel %vm1288, %v1905, 0
    %1915 = vmatprep.subr.bf16.mxu0 0
    %1916 = vmatpush1.bf16.msra.mxu0 0
    %1917 = vmatprep.subr.bf16.mxu0 0
    %1918 = vmatpush1.bf16.msra.mxu0 0
    %1919 = vmatprep.subr.bf16.mxu0 0
    %1920 = vmatpush1.bf16.msra.mxu0 0
    %1921 = vmatprep.subr.bf16.mxu0 0
    %1922 = vmatpush1.bf16.msra.mxu0 0
    %1923 = vmatprep.subr.bf16.mxu0 0
    %1924 = vmatpush1.bf16.msra.mxu0 0
    %1925 = vmatprep.subr.bf16.mxu0 0
    %1926 = vmatpush1.bf16.msra.mxu0 0
    %1927 = vmatprep.subr.bf16.mxu0 0
    %1928 = vmatpush1.bf16.msra.mxu0 0
    %1929 = vmatprep.subr.bf16.mxu0 0
    %1930 = vmatpush1.bf16.msra.mxu0 %v1910
    %1931 = vmatprep.subr.bf16.mxu0 0
    %1932 = vmatpush2.bf16.msra.mxu0 0
    %1933 = vmatprep.subr.bf16.mxu0 0
    %1934 = vmatpush2.bf16.msra.mxu0 0
    %1935 = vmatprep.subr.bf16.mxu0 0
    %1936 = vmatpush2.bf16.msra.mxu0 0
    %1937 = vmatprep.subr.bf16.mxu0 0
    %1938 = vmatpush2.bf16.msra.mxu0 0
    %1939 = vmatprep.subr.bf16.mxu0 0
    %1940 = vmatpush2.bf16.msra.mxu0 0
    %1941 = vmatprep.subr.bf16.mxu0 0
    %1942 = vmatpush2.bf16.msra.mxu0 0
    %1943 = vmatprep.subr.bf16.mxu0 0
    %1944 = vmatpush2.bf16.msra.mxu0 0
    %1945 = vmatprep.subr.bf16.mxu0 0
    %1946 = vmatpush2.bf16.msra.mxu0 0
    %1947 = vmatprep.mubr.bf16.mxu0 0
    %1948 = vmatmul.mubr.bf16.gmra.mxu0 %v1913
    %v1949 = vpop.f32.mrf.mxu0
    %v1950 = vadd.f32 0.0, %v1949
    %v1951 = vpop.f32.mrf.mxu0
    %v1952 = vpop.f32.mrf.mxu0
    %v1953 = vpop.f32.mrf.mxu0
    %1954 = vdwg.mxu0
    %v1955 = vpack.i.b16 %v1409, %v1409
    %v1956 = vlaneseq
    %v1957 = vshrl.u32 %v1956, 7
    %v1958 = vsub.s32 0, %v1957
    %v1959 = vrot.slane %v1955, %v1958
    %v1962 = vunpack.c.l.b16 %v753
    %v1963 = vunpack.c.l.b16 %v754
    %v1964 = vpack.c.b16 %v1963, %v1962
    %v1967 = vsel %vm1288, %v1959, 0
    %1969 = vmatprep.subr.bf16.mxu0 0
    %1970 = vmatpush1.bf16.msra.mxu0 0
    %1971 = vmatprep.subr.bf16.mxu0 0
    %1972 = vmatpush1.bf16.msra.mxu0 0
    %1973 = vmatprep.subr.bf16.mxu0 0
    %1974 = vmatpush1.bf16.msra.mxu0 0
    %1975 = vmatprep.subr.bf16.mxu0 0
    %1976 = vmatpush1.bf16.msra.mxu0 0
    %1977 = vmatprep.subr.bf16.mxu0 0
    %1978 = vmatpush1.bf16.msra.mxu0 0
    %1979 = vmatprep.subr.bf16.mxu0 0
    %1980 = vmatpush1.bf16.msra.mxu0 0
    %1981 = vmatprep.subr.bf16.mxu0 0
    %1982 = vmatpush1.bf16.msra.mxu0 0
    %1983 = vmatprep.subr.bf16.mxu0 0
    %1984 = vmatpush1.bf16.msra.mxu0 %v1964
    %1985 = vmatprep.subr.bf16.mxu0 0
    %1986 = vmatpush2.bf16.msra.mxu0 0
    %1987 = vmatprep.subr.bf16.mxu0 0
    %1988 = vmatpush2.bf16.msra.mxu0 0
    %1989 = vmatprep.subr.bf16.mxu0 0
    %1990 = vmatpush2.bf16.msra.mxu0 0
    %1991 = vmatprep.subr.bf16.mxu0 0
    %1992 = vmatpush2.bf16.msra.mxu0 0
    %1993 = vmatprep.subr.bf16.mxu0 0
    %1994 = vmatpush2.bf16.msra.mxu0 0
    %1995 = vmatprep.subr.bf16.mxu0 0
    %1996 = vmatpush2.bf16.msra.mxu0 0
    %1997 = vmatprep.subr.bf16.mxu0 0
    %1998 = vmatpush2.bf16.msra.mxu0 0
    %1999 = vmatprep.subr.bf16.mxu0 0
    %2000 = vmatpush2.bf16.msra.mxu0 0
    %2001 = vmatprep.mubr.bf16.mxu0 0
    %2002 = vmatmul.mubr.bf16.gmra.mxu0 %v1967
    %v2003 = vpop.f32.mrf.mxu0
    %v2004 = vadd.f32 0.0, %v2003
    %v2005 = vpop.f32.mrf.mxu0
    %v2006 = vpop.f32.mrf.mxu0
    %v2007 = vpop.f32.mrf.mxu0
    %2008 = vdwg.mxu0
    %v2009 = vpack.i.b16 %v1410, %v1410
    %v2010 = vlaneseq
    %v2011 = vshrl.u32 %v2010, 7
    %v2012 = vsub.s32 0, %v2011
    %v2013 = vrot.slane %v2009, %v2012
    %v2016 = vunpack.c.l.b16 %v755
    %v2017 = vunpack.c.l.b16 %v756
    %v2018 = vpack.c.b16 %v2017, %v2016
    %v2021 = vsel %vm1288, %v2013, 0
    %2023 = vmatprep.subr.bf16.mxu0 0
    %2024 = vmatpush1.bf16.msra.mxu0 0
    %2025 = vmatprep.subr.bf16.mxu0 0
    %2026 = vmatpush1.bf16.msra.mxu0 0
    %2027 = vmatprep.subr.bf16.mxu0 0
    %2028 = vmatpush1.bf16.msra.mxu0 0
    %2029 = vmatprep.subr.bf16.mxu0 0
    %2030 = vmatpush1.bf16.msra.mxu0 0
    %2031 = vmatprep.subr.bf16.mxu0 0
    %2032 = vmatpush1.bf16.msra.mxu0 0
    %2033 = vmatprep.subr.bf16.mxu0 0
    %2034 = vmatpush1.bf16.msra.mxu0 0
    %2035 = vmatprep.subr.bf16.mxu0 0
    %2036 = vmatpush1.bf16.msra.mxu0 0
    %2037 = vmatprep.subr.bf16.mxu0 0
    %2038 = vmatpush1.bf16.msra.mxu0 %v2018
    %2039 = vmatprep.subr.bf16.mxu0 0
    %2040 = vmatpush2.bf16.msra.mxu0 0
    %2041 = vmatprep.subr.bf16.mxu0 0
    %2042 = vmatpush2.bf16.msra.mxu0 0
    %2043 = vmatprep.subr.bf16.mxu0 0
    %2044 = vmatpush2.bf16.msra.mxu0 0
    %2045 = vmatprep.subr.bf16.mxu0 0
    %2046 = vmatpush2.bf16.msra.mxu0 0
    %2047 = vmatprep.subr.bf16.mxu0 0
    %2048 = vmatpush2.bf16.msra.mxu0 0
    %2049 = vmatprep.subr.bf16.mxu0 0
    %2050 = vmatpush2.bf16.msra.mxu0 0
    %2051 = vmatprep.subr.bf16.mxu0 0
    %2052 = vmatpush2.bf16.msra.mxu0 0
    %2053 = vmatprep.subr.bf16.mxu0 0
    %2054 = vmatpush2.bf16.msra.mxu0 0
    %2055 = vmatprep.mubr.bf16.mxu0 0
    %2056 = vmatmul.mubr.bf16.gmra.mxu0 %v2021
    %v2057 = vpop.f32.mrf.mxu0
    %v2058 = vadd.f32 0.0, %v2057
    %v2059 = vpop.f32.mrf.mxu0
    %v2060 = vpop.f32.mrf.mxu0
    %v2061 = vpop.f32.mrf.mxu0
    %2062 = vdwg.mxu0
    %v2063 = vpack.i.b16 %v1411, %v1411
    %v2064 = vlaneseq
    %v2065 = vshrl.u32 %v2064, 7
    %v2066 = vsub.s32 0, %v2065
    %v2067 = vrot.slane %v2063, %v2066
    %v2070 = vunpack.c.l.b16 %v757
    %v2071 = vunpack.c.l.b16 %v758
    %v2072 = vpack.c.b16 %v2071, %v2070
    %v2075 = vsel %vm1288, %v2067, 0
    %2077 = vmatprep.subr.bf16.mxu0 0
    %2078 = vmatpush1.bf16.msra.mxu0 0
    %2079 = vmatprep.subr.bf16.mxu0 0
    %2080 = vmatpush1.bf16.msra.mxu0 0
    %2081 = vmatprep.subr.bf16.mxu0 0
    %2082 = vmatpush1.bf16.msra.mxu0 0
    %2083 = vmatprep.subr.bf16.mxu0 0
    %2084 = vmatpush1.bf16.msra.mxu0 0
    %2085 = vmatprep.subr.bf16.mxu0 0
    %2086 = vmatpush1.bf16.msra.mxu0 0
    %2087 = vmatprep.subr.bf16.mxu0 0
    %2088 = vmatpush1.bf16.msra.mxu0 0
    %2089 = vmatprep.subr.bf16.mxu0 0
    %2090 = vmatpush1.bf16.msra.mxu0 0
    %2091 = vmatprep.subr.bf16.mxu0 0
    %2092 = vmatpush1.bf16.msra.mxu0 %v2072
    %2093 = vmatprep.subr.bf16.mxu0 0
    %2094 = vmatpush2.bf16.msra.mxu0 0
    %2095 = vmatprep.subr.bf16.mxu0 0
    %2096 = vmatpush2.bf16.msra.mxu0 0
    %2097 = vmatprep.subr.bf16.mxu0 0
    %2098 = vmatpush2.bf16.msra.mxu0 0
    %2099 = vmatprep.subr.bf16.mxu0 0
    %2100 = vmatpush2.bf16.msra.mxu0 0
    %2101 = vmatprep.subr.bf16.mxu0 0
    %2102 = vmatpush2.bf16.msra.mxu0 0
    %2103 = vmatprep.subr.bf16.mxu0 0
    %2104 = vmatpush2.bf16.msra.mxu0 0
    %2105 = vmatprep.subr.bf16.mxu0 0
    %2106 = vmatpush2.bf16.msra.mxu0 0
    %2107 = vmatprep.subr.bf16.mxu0 0
    %2108 = vmatpush2.bf16.msra.mxu0 0
    %2109 = vmatprep.mubr.bf16.mxu0 0
    %2110 = vmatmul.mubr.bf16.gmra.mxu0 %v2075
    %v2111 = vpop.f32.mrf.mxu0
    %v2112 = vadd.f32 0.0, %v2111
    %v2113 = vpop.f32.mrf.mxu0
    %v2114 = vpop.f32.mrf.mxu0
    %v2115 = vpop.f32.mrf.mxu0
    %2116 = vdwg.mxu0
    %v2117 = vpack.i.b16 %v1412, %v1412
    %v2118 = vlaneseq
    %v2119 = vshrl.u32 %v2118, 7
    %v2120 = vsub.s32 0, %v2119
    %v2121 = vrot.slane %v2117, %v2120
    %v2124 = vunpack.c.l.b16 %v759
    %v2125 = vunpack.c.l.b16 %v760
    %v2126 = vpack.c.b16 %v2125, %v2124
    %v2129 = vsel %vm1288, %v2121, 0
    %2131 = vmatprep.subr.bf16.mxu0 0
    %2132 = vmatpush1.bf16.msra.mxu0 0
    %2133 = vmatprep.subr.bf16.mxu0 0
    %2134 = vmatpush1.bf16.msra.mxu0 0
    %2135 = vmatprep.subr.bf16.mxu0 0
    %2136 = vmatpush1.bf16.msra.mxu0 0
    %2137 = vmatprep.subr.bf16.mxu0 0
    %2138 = vmatpush1.bf16.msra.mxu0 0
    %2139 = vmatprep.subr.bf16.mxu0 0
    %2140 = vmatpush1.bf16.msra.mxu0 0
    %2141 = vmatprep.subr.bf16.mxu0 0
    %2142 = vmatpush1.bf16.msra.mxu0 0
    %2143 = vmatprep.subr.bf16.mxu0 0
    %2144 = vmatpush1.bf16.msra.mxu0 0
    %2145 = vmatprep.subr.bf16.mxu0 0
    %2146 = vmatpush1.bf16.msra.mxu0 %v2126
    %2147 = vmatprep.subr.bf16.mxu0 0
    %2148 = vmatpush2.bf16.msra.mxu0 0
    %2149 = vmatprep.subr.bf16.mxu0 0
    %2150 = vmatpush2.bf16.msra.mxu0 0
    %2151 = vmatprep.subr.bf16.mxu0 0
    %2152 = vmatpush2.bf16.msra.mxu0 0
    %2153 = vmatprep.subr.bf16.mxu0 0
    %2154 = vmatpush2.bf16.msra.mxu0 0
    %2155 = vmatprep.subr.bf16.mxu0 0
    %2156 = vmatpush2.bf16.msra.mxu0 0
    %2157 = vmatprep.subr.bf16.mxu0 0
    %2158 = vmatpush2.bf16.msra.mxu0 0
    %2159 = vmatprep.subr.bf16.mxu0 0
    %2160 = vmatpush2.bf16.msra.mxu0 0
    %2161 = vmatprep.subr.bf16.mxu0 0
    %2162 = vmatpush2.bf16.msra.mxu0 0
    %2163 = vmatprep.mubr.bf16.mxu0 0
    %2164 = vmatmul.mubr.bf16.gmra.mxu0 %v2129
    %v2165 = vpop.f32.mrf.mxu0
    %v2166 = vadd.f32 0.0, %v2165
    %v2167 = vpop.f32.mrf.mxu0
    %v2168 = vpop.f32.mrf.mxu0
    %v2169 = vpop.f32.mrf.mxu0
    %2170 = vdwg.mxu0
    %v2171 = vpack.i.b16 %v1413, %v1413
    %v2172 = vlaneseq
    %v2173 = vshrl.u32 %v2172, 7
    %v2174 = vsub.s32 0, %v2173
    %v2175 = vrot.slane %v2171, %v2174
    %v2178 = vunpack.c.l.b16 %v761
    %v2179 = vunpack.c.l.b16 %v762
    %v2180 = vpack.c.b16 %v2179, %v2178
    %v2183 = vsel %vm1288, %v2175, 0
    %2185 = vmatprep.subr.bf16.mxu0 0
    %2186 = vmatpush1.bf16.msra.mxu0 0
    %2187 = vmatprep.subr.bf16.mxu0 0
    %2188 = vmatpush1.bf16.msra.mxu0 0
    %2189 = vmatprep.subr.bf16.mxu0 0
    %2190 = vmatpush1.bf16.msra.mxu0 0
    %2191 = vmatprep.subr.bf16.mxu0 0
    %2192 = vmatpush1.bf16.msra.mxu0 0
    %2193 = vmatprep.subr.bf16.mxu0 0
    %2194 = vmatpush1.bf16.msra.mxu0 0
    %2195 = vmatprep.subr.bf16.mxu0 0
    %2196 = vmatpush1.bf16.msra.mxu0 0
    %2197 = vmatprep.subr.bf16.mxu0 0
    %2198 = vmatpush1.bf16.msra.mxu0 0
    %2199 = vmatprep.subr.bf16.mxu0 0
    %2200 = vmatpush1.bf16.msra.mxu0 %v2180
    %2201 = vmatprep.subr.bf16.mxu0 0
    %2202 = vmatpush2.bf16.msra.mxu0 0
    %2203 = vmatprep.subr.bf16.mxu0 0
    %2204 = vmatpush2.bf16.msra.mxu0 0
    %2205 = vmatprep.subr.bf16.mxu0 0
    %2206 = vmatpush2.bf16.msra.mxu0 0
    %2207 = vmatprep.subr.bf16.mxu0 0
    %2208 = vmatpush2.bf16.msra.mxu0 0
    %2209 = vmatprep.subr.bf16.mxu0 0
    %2210 = vmatpush2.bf16.msra.mxu0 0
    %2211 = vmatprep.subr.bf16.mxu0 0
    %2212 = vmatpush2.bf16.msra.mxu0 0
    %2213 = vmatprep.subr.bf16.mxu0 0
    %2214 = vmatpush2.bf16.msra.mxu0 0
    %2215 = vmatprep.subr.bf16.mxu0 0
    %2216 = vmatpush2.bf16.msra.mxu0 0
    %2217 = vmatprep.mubr.bf16.mxu0 0
    %2218 = vmatmul.mubr.bf16.gmra.mxu0 %v2183
    %v2219 = vpop.f32.mrf.mxu0
    %v2220 = vadd.f32 0.0, %v2219
    %v2221 = vpop.f32.mrf.mxu0
    %v2222 = vpop.f32.mrf.mxu0
    %v2223 = vpop.f32.mrf.mxu0
    %2224 = vdwg.mxu0
    %v2225 = vpack.i.b16 %v1414, %v1414
    %v2226 = vlaneseq
    %v2227 = vshrl.u32 %v2226, 7
    %v2228 = vsub.s32 0, %v2227
    %v2229 = vrot.slane %v2225, %v2228
    %v2232 = vunpack.c.l.b16 %v763
    %v2233 = vunpack.c.l.b16 %v764
    %v2234 = vpack.c.b16 %v2233, %v2232
    %v2237 = vsel %vm1288, %v2229, 0
    %2239 = vmatprep.subr.bf16.mxu0 0
    %2240 = vmatpush1.bf16.msra.mxu0 0
    %2241 = vmatprep.subr.bf16.mxu0 0
    %2242 = vmatpush1.bf16.msra.mxu0 0
    %2243 = vmatprep.subr.bf16.mxu0 0
    %2244 = vmatpush1.bf16.msra.mxu0 0
    %2245 = vmatprep.subr.bf16.mxu0 0
    %2246 = vmatpush1.bf16.msra.mxu0 0
    %2247 = vmatprep.subr.bf16.mxu0 0
    %2248 = vmatpush1.bf16.msra.mxu0 0
    %2249 = vmatprep.subr.bf16.mxu0 0
    %2250 = vmatpush1.bf16.msra.mxu0 0
    %2251 = vmatprep.subr.bf16.mxu0 0
    %2252 = vmatpush1.bf16.msra.mxu0 0
    %2253 = vmatprep.subr.bf16.mxu0 0
    %2254 = vmatpush1.bf16.msra.mxu0 %v2234
    %2255 = vmatprep.subr.bf16.mxu0 0
    %2256 = vmatpush2.bf16.msra.mxu0 0
    %2257 = vmatprep.subr.bf16.mxu0 0
    %2258 = vmatpush2.bf16.msra.mxu0 0
    %2259 = vmatprep.subr.bf16.mxu0 0
    %2260 = vmatpush2.bf16.msra.mxu0 0
    %2261 = vmatprep.subr.bf16.mxu0 0
    %2262 = vmatpush2.bf16.msra.mxu0 0
    %2263 = vmatprep.subr.bf16.mxu0 0
    %2264 = vmatpush2.bf16.msra.mxu0 0
    %2265 = vmatprep.subr.bf16.mxu0 0
    %2266 = vmatpush2.bf16.msra.mxu0 0
    %2267 = vmatprep.subr.bf16.mxu0 0
    %2268 = vmatpush2.bf16.msra.mxu0 0
    %2269 = vmatprep.subr.bf16.mxu0 0
    %2270 = vmatpush2.bf16.msra.mxu0 0
    %2271 = vmatprep.mubr.bf16.mxu0 0
    %2272 = vmatmul.mubr.bf16.gmra.mxu0 %v2237
    %v2273 = vpop.f32.mrf.mxu0
    %v2274 = vadd.f32 0.0, %v2273
    %v2275 = vpop.f32.mrf.mxu0
    %v2276 = vpop.f32.mrf.mxu0
    %v2277 = vpop.f32.mrf.mxu0
    %2278 = vdwg.mxu0
    %v2295 = vrot.slane %v1518, 7
    %v2296 = vsel %vm1261, %v2295, %v1464
    %v2297 = vrot.slane %v1572, 6
    %v2298 = vsel %vm1263, %v2297, %v2296
    %v2299 = vrot.slane %v1626, 5
    %v2300 = vsel %vm1265, %v2299, %v2298
    %v2301 = vrot.slane %v1680, 4
    %v2302 = vsel %vm1267, %v2301, %v2300
    %v2303 = vrot.slane %v1734, 3
    %v2304 = vsel %vm1269, %v2303, %v2302
    %v2305 = vrot.slane %v1788, 2
    %v2306 = vsel %vm1271, %v2305, %v2304
    %v2307 = vrot.slane %v1842, 1
    %v2308 = vsel %vm1273, %v2307, %v2306
    %v2309 = vrot.slane %v1950, 7
    %v2310 = vsel %vm1261, %v2309, %v1896
    %v2311 = vrot.slane %v2004, 6
    %v2312 = vsel %vm1263, %v2311, %v2310
    %v2313 = vrot.slane %v2058, 5
    %v2314 = vsel %vm1265, %v2313, %v2312
    %v2315 = vrot.slane %v2112, 4
    %v2316 = vsel %vm1267, %v2315, %v2314
    %v2317 = vrot.slane %v2166, 3
    %v2318 = vsel %vm1269, %v2317, %v2316
    %v2319 = vrot.slane %v2220, 2
    %v2320 = vsel %vm1271, %v2319, %v2318
    %v2321 = vrot.slane %v2274, 1
    %v2322 = vsel %vm1273, %v2321, %v2320
    %v2325 = vadd.f32 %v1346, %v2308
    %v2326 = vadd.f32 %v1347, %v2322
    %2327 = vst [vmem:[#allocation5] sm:$0xff] %v2325
    %2328 = vst [vmem:[#allocation5 + $0x8] sm:$0xff] %v2326
    %2329 = vst.msk [vmem:[#allocation3] sm:$0xff] %vm1331, %v1295
    %2330 = vst.msk [vmem:[#allocation3 + $0x8] sm:$0xff] %vm1331, %v1296
    // Predicated region
    $region74: #{tpu_custom_call.1} parent=1 // pred_check
      %p2331 = pneg %p135
    $region75: #{tpu_custom_call.1} parent=1 // pred_check_branch
      %2333 = sbr.rel (%p2331) target = $region77
    $region76: #{tpu_custom_call.1} parent=1 // pred_region
      %v2334 = vld [vmem:[#allocation5] sm:$0xff]
      %v2335 = vld [vmem:[#allocation5 + $0x8] sm:$0xff]
      %v2336 = vld [vmem:[#allocation4] sm:$0xff]
      %v2337 = vld [vmem:[#allocation4 + $0x8] sm:$0xff]
      %v2338 = vrcp.pop %v2336
      %v2339 = vrcp.pop %v2337
      %2341 = vset.pattern.permute.xlu0 0
      %2342 = vperm.xlu0 %2341, %v2338
      %v2343 = vpop.permute.xlu0 %2342
      %2346 = vset.pattern.permute.xlu0 0
      %2347 = vperm.xlu0 %2346, %v2339
      %v2348 = vpop.permute.xlu0 %2347
      %v2350 = vmul.f32 %v2334, %v2343
      %v2351 = vmul.f32 %v2335, %v2348
      %v2352 = vld [vmem:[#allocation2] sm:$0xf]
      %v2353 = vld [vmem:[#allocation2 + $0x4] sm:$0xf]
      %v2354 = vld [vmem:[#allocation15] sm:$0xf]
      %v2355 = vld [vmem:[#allocation15 + $0x4] sm:$0xf]
      %v2356 = vld [vmem:[#allocation15 + $0x8] sm:$0xf]
      %v2357 = vld [vmem:[#allocation15 + $0xc] sm:$0xf]
      %v2358 = vld [vmem:[#allocation15 + $0x10] sm:$0xf]
      %v2359 = vld [vmem:[#allocation15 + $0x14] sm:$0xf]
      %v2360 = vld [vmem:[#allocation15 + $0x18] sm:$0xf]
      %v2361 = vld [vmem:[#allocation15 + $0x1c] sm:$0xf]
      %v2362 = vld [vmem:[#allocation15 + $0x20] sm:$0xf]
      %v2363 = vld [vmem:[#allocation15 + $0x24] sm:$0xf]
      %v2364 = vld [vmem:[#allocation15 + $0x28] sm:$0xf]
      %v2365 = vld [vmem:[#allocation15 + $0x2c] sm:$0xf]
      %v2366 = vld [vmem:[#allocation15 + $0x30] sm:$0xf]
      %v2367 = vld [vmem:[#allocation15 + $0x34] sm:$0xf]
      %v2368 = vld [vmem:[#allocation15 + $0x38] sm:$0xf]
      %v2369 = vld [vmem:[#allocation15 + $0x3c] sm:$0xf]
      %v2370 = vpack.c.bf16 %v2351, %v2350
      %v2371 = vld [vmem:[#allocation17] sm:$0xf]
      %v2372 = vld [vmem:[#allocation17 + $0x4] sm:$0xf]
      %v2373 = vld [vmem:[#allocation17 + $0x8] sm:$0xf]
      %v2374 = vld [vmem:[#allocation17 + $0xc] sm:$0xf]
      %v2375 = vld [vmem:[#allocation17 + $0x10] sm:$0xf]
      %v2376 = vld [vmem:[#allocation17 + $0x14] sm:$0xf]
      %v2377 = vld [vmem:[#allocation17 + $0x18] sm:$0xf]
      %v2378 = vld [vmem:[#allocation17 + $0x1c] sm:$0xf]
      %v2379 = vld [vmem:[#allocation17 + $0x20] sm:$0xf]
      %v2380 = vld [vmem:[#allocation17 + $0x24] sm:$0xf]
      %v2381 = vld [vmem:[#allocation17 + $0x28] sm:$0xf]
      %v2382 = vld [vmem:[#allocation17 + $0x2c] sm:$0xf]
      %v2383 = vld [vmem:[#allocation17 + $0x30] sm:$0xf]
      %v2384 = vld [vmem:[#allocation17 + $0x34] sm:$0xf]
      %v2385 = vld [vmem:[#allocation17 + $0x38] sm:$0xf]
      %v2386 = vld [vmem:[#allocation17 + $0x3c] sm:$0xf]
      %v2403 = vunpack.c.l.b16 %v2371
      %v2404 = vunpack.c.l.b16 %v2372
      %v2405 = vunpack.c.l.b16 %v2373
      %v2406 = vunpack.c.l.b16 %v2374
      %v2407 = vunpack.c.l.b16 %v2375
      %v2408 = vunpack.c.l.b16 %v2376
      %v2409 = vunpack.c.l.b16 %v2377
      %v2410 = vunpack.c.l.b16 %v2378
      %v2411 = vunpack.c.l.b16 %v2379
      %v2412 = vunpack.c.l.b16 %v2380
      %v2413 = vunpack.c.l.b16 %v2381
      %v2414 = vunpack.c.l.b16 %v2382
      %v2415 = vunpack.c.l.b16 %v2383
      %v2416 = vunpack.c.l.b16 %v2384
      %v2417 = vunpack.c.l.b16 %v2385
      %v2418 = vunpack.c.l.b16 %v2386
      %v2419 = vpack.c.b16 %v2404, %v2403
      %v2420 = vpack.c.b16 %v2406, %v2405
      %v2421 = vpack.c.b16 %v2408, %v2407
      %v2422 = vpack.c.b16 %v2410, %v2409
      %v2423 = vpack.c.b16 %v2412, %v2411
      %v2424 = vpack.c.b16 %v2414, %v2413
      %v2425 = vpack.c.b16 %v2416, %v2415
      %v2426 = vpack.c.b16 %v2418, %v2417
      %2435 = vmatprep.subr.bf16.mxu0 0
      %2436 = vmatpush1.bf16.msra.mxu0 %v2426
      %2437 = vmatprep.subr.bf16.mxu0 0
      %2438 = vmatpush1.bf16.msra.mxu0 %v2425
      %2439 = vmatprep.subr.bf16.mxu0 0
      %2440 = vmatpush1.bf16.msra.mxu0 %v2424
      %2441 = vmatprep.subr.bf16.mxu0 0
      %2442 = vmatpush1.bf16.msra.mxu0 %v2423
      %2443 = vmatprep.subr.bf16.mxu0 0
      %2444 = vmatpush1.bf16.msra.mxu0 %v2422
      %2445 = vmatprep.subr.bf16.mxu0 0
      %2446 = vmatpush1.bf16.msra.mxu0 %v2421
      %2447 = vmatprep.subr.bf16.mxu0 0
      %2448 = vmatpush1.bf16.msra.mxu0 %v2420
      %2449 = vmatprep.subr.bf16.mxu0 0
      %2450 = vmatpush1.bf16.msra.mxu0 %v2419
      %2451 = vmatprep.subr.bf16.mxu0 0
      %2452 = vmatpush2.bf16.msra.mxu0 0
      %2453 = vmatprep.subr.bf16.mxu0 0
      %2454 = vmatpush2.bf16.msra.mxu0 0
      %2455 = vmatprep.subr.bf16.mxu0 0
      %2456 = vmatpush2.bf16.msra.mxu0 0
      %2457 = vmatprep.subr.bf16.mxu0 0
      %2458 = vmatpush2.bf16.msra.mxu0 0
      %2459 = vmatprep.subr.bf16.mxu0 0
      %2460 = vmatpush2.bf16.msra.mxu0 0
      %2461 = vmatprep.subr.bf16.mxu0 0
      %2462 = vmatpush2.bf16.msra.mxu0 0
      %2463 = vmatprep.subr.bf16.mxu0 0
      %2464 = vmatpush2.bf16.msra.mxu0 0
      %2465 = vmatprep.subr.bf16.mxu0 0
      %2466 = vmatpush2.bf16.msra.mxu0 0
      %2467 = vmatprep.mubr.bf16.mxu0 0
      %2468 = vmatmul.mubr.bf16.gmra.mxu0 %v2370
      %v2469 = vpop.f32.mrf.mxu0
      %v2470 = vadd.f32 0.0, %v2469
      %v2471 = vpop.f32.mrf.mxu0
      %v2472 = vpop.f32.mrf.mxu0
      %v2473 = vadd.f32 0.0, %v2472
      %v2474 = vpop.f32.mrf.mxu0
      %2475 = vdwg.mxu0
      %v2478 = vunpack.c.l.b16 %v2352
      %v2479 = vunpack.c.l.b16 %v2353
      %v2480 = vpack.c.b16 %v2479, %v2478
      %v2498 = vunpack.c.l.b16 %v2354
      %v2499 = vunpack.c.l.b16 %v2355
      %v2500 = vunpack.c.l.b16 %v2356
      %v2501 = vunpack.c.l.b16 %v2357
      %v2502 = vunpack.c.l.b16 %v2358
      %v2503 = vunpack.c.l.b16 %v2359
      %v2504 = vunpack.c.l.b16 %v2360
      %v2505 = vunpack.c.l.b16 %v2361
      %v2506 = vunpack.c.l.b16 %v2362
      %v2507 = vunpack.c.l.b16 %v2363
      %v2508 = vunpack.c.l.b16 %v2364
      %v2509 = vunpack.c.l.b16 %v2365
      %v2510 = vunpack.c.l.b16 %v2366
      %v2511 = vunpack.c.l.b16 %v2367
      %v2512 = vunpack.c.l.b16 %v2368
      %v2513 = vunpack.c.l.b16 %v2369
      %v2514 = vpack.c.b16 %v2499, %v2498
      %v2515 = vpack.c.b16 %v2501, %v2500
      %v2516 = vpack.c.b16 %v2503, %v2502
      %v2517 = vpack.c.b16 %v2505, %v2504
      %v2518 = vpack.c.b16 %v2507, %v2506
      %v2519 = vpack.c.b16 %v2509, %v2508
      %v2520 = vpack.c.b16 %v2511, %v2510
      %v2521 = vpack.c.b16 %v2513, %v2512
      %2530 = vmatprep.subr.bf16.mxu0 0
      %2531 = vmatpush1.bf16.msra.mxu0 %v2521
      %2532 = vmatprep.subr.bf16.mxu0 0
      %2533 = vmatpush1.bf16.msra.mxu0 %v2520
      %2534 = vmatprep.subr.bf16.mxu0 0
      %2535 = vmatpush1.bf16.msra.mxu0 %v2519
      %2536 = vmatprep.subr.bf16.mxu0 0
      %2537 = vmatpush1.bf16.msra.mxu0 %v2518
      %2538 = vmatprep.subr.bf16.mxu0 0
      %2539 = vmatpush1.bf16.msra.mxu0 %v2517
      %2540 = vmatprep.subr.bf16.mxu0 0
      %2541 = vmatpush1.bf16.msra.mxu0 %v2516
      %2542 = vmatprep.subr.bf16.mxu0 0
      %2543 = vmatpush1.bf16.msra.mxu0 %v2515
      %2544 = vmatprep.subr.bf16.mxu0 0
      %2545 = vmatpush1.bf16.msra.mxu0 %v2514
      %2546 = vmatprep.subr.bf16.mxu0 0
      %2547 = vmatpush2.bf16.msra.mxu0 0
      %2548 = vmatprep.subr.bf16.mxu0 0
      %2549 = vmatpush2.bf16.msra.mxu0 0
      %2550 = vmatprep.subr.bf16.mxu0 0
      %2551 = vmatpush2.bf16.msra.mxu0 0
      %2552 = vmatprep.subr.bf16.mxu0 0
      %2553 = vmatpush2.bf16.msra.mxu0 0
      %2554 = vmatprep.subr.bf16.mxu0 0
      %2555 = vmatpush2.bf16.msra.mxu0 0
      %2556 = vmatprep.subr.bf16.mxu0 0
      %2557 = vmatpush2.bf16.msra.mxu0 0
      %2558 = vmatprep.subr.bf16.mxu0 0
      %2559 = vmatpush2.bf16.msra.mxu0 0
      %2560 = vmatprep.subr.bf16.mxu0 0
      %2561 = vmatpush2.bf16.msra.mxu0 0
      %2562 = vmatprep.mubr.bf16.mxu0 0
      %2563 = vmatmul.mubr.bf16.gmra.mxu0 %v2480
      %v2564 = vpop.f32.mrf.mxu0
      %v2565 = vadd.f32 %v2470, %v2564
      %v2566 = vpop.f32.mrf.mxu0
      %v2567 = vpop.f32.mrf.mxu0
      %v2568 = vadd.f32 %v2473, %v2567
      %v2569 = vpop.f32.mrf.mxu0
      %2570 = vdwg.mxu0
      %v2571 = vld [vmem:[%s9] sm:$0x1]
      %v2573 = vlaneseq
      %v2574 = vshrl.u32 %v2573, 7
      %v2575 = vsub.s32 0, %v2574
      %v2576 = vrot.slane %v2571, %v2575
      %v2578 = vadd.f32 %v2565, %v2576
      %v2579 = vadd.f32 %v2568, %v2576
      %v2580 = vtanh.pop %v2578
      %v2581 = vtanh.pop %v2579
      %v2582 = vpack.c.bf16 %v2581, %v2580
      %v2584 = vunpack.c.l.b16 %v2582
      %v2585 = vunpack.c.h.b16 %v2582
      %v2586 = vpack.c.b16 %v2584, %v2584
      %v2587 = vpack.c.b16 %v2585, %v2585
      %2590 = vst [vmem:[#allocation19] sm:$0xf] %v2586
      %2591 = vst [vmem:[#allocation19 + $0x4] sm:$0xf] %v2587
    $region77: #{tpu_custom_call.1} parent=1 // pred_fallthru
      _
    // Predicated region
    $region78: #{tpu_custom_call.1} parent=1 // pred_check
      _
    $region79: #{tpu_custom_call.1} parent=1 // pred_check_branch
      %2593 = sbr.rel (0) target = $region81
    $region80: #{tpu_custom_call.1} parent=1 // pred_region
      %s2595 = ssub.s32 256, 256
      %2596 = vsyncadd [#allocation8], %s2595
      %s2597 = sshll.u32 [#allocation18], 4
      %s2598 = int_to_ptr.vmem [resolvable:$true] %s2597
      %2603 = dma.vmem_to_hbm [thread:$0]  %s2598, 256, %s10, [#allocation8], 128, 128, 8
    $region81: #{tpu_custom_call.1} parent=1 // pred_fallthru
      _
    // Predicated region
    $region82: #{tpu_custom_call.1} parent=1 // pred_check
      _
    $region83: #{tpu_custom_call.1} parent=1 // pred_check_branch
      %2605 = sbr.rel (0) target = $region85
    $region84: #{tpu_custom_call.1} parent=1 // pred_region
      %s2607 = ssub.s32 128, 128
      %2608 = vsyncadd [#allocation20], %s2607
      %s2609 = sshll.u32 [#allocation19], 4
      %s2610 = int_to_ptr.vmem [resolvable:$true] %s2609
      %2615 = dma.vmem_to_hbm [thread:$0]  %s2610, 128, %s11, [#allocation20], 64, 64, 4
    $region85: #{tpu_custom_call.1} parent=1 // pred_fallthru
      _
    // Predicated region
    $region86: #{tpu_custom_call.1} parent=1 // pred_check
      _
    $region87: #{tpu_custom_call.1} parent=1 // pred_check_branch
      %2617 = sbr.rel (0) target = $region89
    $region88: #{tpu_custom_call.1} parent=1 // pred_region
      %2618 = dma.done [#allocation8], 256
    $region89: #{tpu_custom_call.1} parent=1 // pred_fallthru
      _
    // Predicated region
    $region90: #{tpu_custom_call.1} parent=1 // pred_check
      _
    $region91: #{tpu_custom_call.1} parent=1 // pred_check_branch
      %2620 = sbr.rel (0) target = $region93
    $region92: #{tpu_custom_call.1} parent=1 // pred_region
      %2621 = dma.done [#allocation20], 128
    $region93: #{tpu_custom_call.1} parent=1 // pred_fallthru
      _
    %2622 = vsyncpa [#allocation7], 1
    %2623 = vsyncpa [#allocation10], 1
    %2624 = vsyncpa [#allocation13], 1
    %2625 = vsyncpa [#allocation16], 1
    %2626 = vsyncpa [#allocation8], 1
    %2627 = vsyncpa [#allocation20], 1

</llo_original>
